<compile_context>
chip_gen: v6e
topology: v6e:2x2x1
jax: 0.10.0
libtpu: 0.0.40
codegen_flags: <defaults>
</compile_context>

<pallas_src>
import functools

import jax
import jax.numpy as jnp
from jax.experimental import pallas as pl
from jax.experimental.pallas import tpu as pltpu

K_SZ = 3
EPS = 1e-5


def resnet_block_kernel(x_ref, bw1_ref, g1_ref, be1_ref,
                        bw2_ref, g2_ref, be2_ref, gmean_ref,
                        out_ref, *, H):
    # x_ref     : (N*H, W*C) f32      input rows=(n,h), lanes=w*C+c
    # bwX_ref   : (3*W*C, W*C) bf16   stacked banded conv weights (kh-major)
    # gX/beX    : (1, W*C) f32        BN gamma / beta tiled over w
    # gmean_ref : (W*C, W*C) bf16     0 or 1/(N*H*W); sums lanes of a channel
    # out_ref   : (N*H, W*C) f32
    NH, WC = x_ref.shape

    x = x_ref[...]
    gm = gmean_ref[...]

    hrow = jax.lax.broadcasted_iota(jnp.int32, (NH, WC), 0) % H
    top = hrow == 0            # rows with no valid row above (h == 0)
    bot = hrow == (H - 1)      # rows with no valid row below (h == H-1)

    def conv(a, bw_ref):
        # One fused (NH, 3*WC) x (3*WC, WC) bf16 matmul, f32 accumulation.
        # pltpu.roll runs on the XLU; the mask zeroes the vertical padding
        # rows (and the wrap-around / cross-image rows from the rotation).
        up = jnp.where(top, 0.0, pltpu.roll(a, 1, axis=0))       # tap kh=0: row h-1
        dn = jnp.where(bot, 0.0, pltpu.roll(a, NH - 1, axis=0))  # tap kh=2: row h+1
        lhs = jnp.concatenate([up, a, dn], axis=1).astype(jnp.bfloat16)
        return jnp.dot(lhs, bw_ref[...], preferred_element_type=jnp.float32)

    def batch_norm(acc, gamma_row, beta_row):
        # Training-mode batch stats over (N, H, W), one pass: var = E[x^2]-mean^2.
        # Per-lane partial sums -> per-channel mean via the scaled group-sum
        # matmul (broadcast back to the lane layout in the same op).
        rsum = jnp.sum(acc, axis=0, keepdims=True)            # (1, WC)
        rsq = jnp.sum(acc * acc, axis=0, keepdims=True)       # (1, WC)
        stats = jnp.dot(
            jnp.concatenate([rsum, rsq], axis=0).astype(jnp.bfloat16), gm,
            preferred_element_type=jnp.float32)                # (2, WC) f32
        mean = stats[0:1, :]
        var = stats[1:2, :] - mean * mean
        return (acc - mean) * jax.lax.rsqrt(var + EPS) * gamma_row + beta_row

    a1 = conv(x, bw1_ref)                                      # conv bias cancelled by BN
    y1 = jnp.maximum(batch_norm(a1, g1_ref[...], be1_ref[...]), 0.0)
    a2 = conv(y1, bw2_ref)
    y2 = batch_norm(a2, g2_ref[...], be2_ref[...])
    out_ref[...] = jnp.maximum(x + y2, 0.0)                    # lane-dense store


def _banded_weights(w_oihw, W):
    """torch (Cout, Cin, 3, 3) -> (3, W*C, W*C) banded block matrices.

    bands[kh, w'*C + cin, w*C + cout] = weight[cout, cin, kh, w'-w+1]
    (zero outside the band, which implements the horizontal 'same' padding).
    """
    _, Cin, KH, KW = w_oihw.shape
    C = Cin
    wk = jnp.transpose(w_oihw, (2, 3, 1, 0))                   # (kh, kw, cin, cout)
    idx = jnp.arange(W * C)
    wp, cin = idx // C, idx % C                                 # source lane
    wo, cout = idx // C, idx % C                                # destination lane
    kw = wp[:, None] - wo[None, :] + (KW // 2)                  # (WC, WC)
    valid = (kw >= 0) & (kw < KW)
    kw_c = jnp.clip(kw, 0, KW - 1)
    cin_b = jnp.broadcast_to(cin[:, None], kw.shape)
    cout_b = jnp.broadcast_to(cout[None, :], kw.shape)
    bands = wk[:, kw_c, cin_b, cout_b]                          # (3, WC, WC)
    return bands * valid.astype(bands.dtype)[None]


def _stacked_banded_weights(w_oihw, W):
    """(3, WC, WC) bands -> (3*WC, WC) bf16, kh-major (matches LHS lane concat)."""
    bands = _banded_weights(w_oihw.astype(jnp.float32), W)
    WC = bands.shape[-1]
    return bands.reshape(K_SZ * WC, WC).astype(jnp.bfloat16)


def _group_mean_matrix(W, C, cnt):
    """(W*C, W*C) bf16: (rowvec @ G)[w*C+c] = mean over lanes of channel c * W/cnt...
    i.e. entries are 1/cnt on same-channel lanes, 0 elsewhere (1/cnt scale folded in;
    exact in bf16 when cnt is a power of two, <=0.4% scale error otherwise)."""
    ch = jnp.arange(W * C) % C
    g = (ch[:, None] == ch[None, :]).astype(jnp.float32) / cnt
    return g.astype(jnp.bfloat16)


def resnet_block_pallas(x_nchw, params):
    """x_nchw: (N, C, H, W) float32, C == mid_ch. Returns (N, C, H, W)."""
    w1, b1, g1, be1, w2, b2, g2, be2 = params
    del b1, b2  # per-channel conv bias is exactly cancelled by training-mode BN
    N, C, H, W = x_nchw.shape
    NH, WC = N * H, W * C

    # NCHW -> lane-dense (N*H, W*C) row slab (layout plumbing stays in XLA).
    x = jnp.transpose(x_nchw, (0, 2, 3, 1)).astype(jnp.float32).reshape(NH, WC)

    bw1 = _stacked_banded_weights(w1, W)
    bw2 = _stacked_banded_weights(w2, W)
    gmean = _group_mean_matrix(W, C, float(N * H * W))

    def lanes(v):  # per-channel (C,) -> (1, W*C), channel-fastest lane layout
        return jnp.tile(v.astype(jnp.float32), W).reshape(1, WC)

    kernel = functools.partial(resnet_block_kernel, H=H)
    vspec = pl.BlockSpec(memory_space=pltpu.MemorySpace.VMEM)

    out = pl.pallas_call(
        kernel,
        out_shape=jax.ShapeDtypeStruct((NH, WC), jnp.float32),
        in_specs=[vspec] * 8,
        out_specs=vspec,
    )(x, bw1, lanes(g1), lanes(be1), bw2, lanes(g2), lanes(be2), gmean)

    return jnp.transpose(out.reshape(N, H, W, C), (0, 3, 1, 2))


def resnet_block_reference(x_nchw, params):
    """Pure-JAX reference matching the PyTorch forward (training-mode BN)."""
    w1, b1, g1, be1, w2, b2, g2, be2 = params

    def conv(x, w, b):
        y = jax.lax.conv_general_dilated(
            x, w, window_strides=(1, 1), padding='SAME',
            dimension_numbers=('NCHW', 'OIHW', 'NCHW'))
        return y + b[None, :, None, None]

    def bn(x, g, be):
        mean = jnp.mean(x, axis=(0, 2, 3), keepdims=True)
        var = jnp.mean((x - mean) ** 2, axis=(0, 2, 3), keepdims=True)
        return ((x - mean) * jax.lax.rsqrt(var + EPS)
                * g[None, :, None, None] + be[None, :, None, None])

    y = jax.nn.relu(bn(conv(x_nchw, w1, b1), g1, be1))
    y = bn(conv(y, w2, b2), g2, be2)
    return jax.nn.relu(x_nchw + y)


def make_params(key, mid_ch):
    ks = jax.random.split(key, 8)
    w1 = 0.1 * jax.random.normal(ks[0], (mid_ch, mid_ch, K_SZ, K_SZ), jnp.float32)
    b1 = 0.1 * jax.random.normal(ks[1], (mid_ch,), jnp.float32)
    g1 = 1.0 + 0.1 * jax.random.normal(ks[2], (mid_ch,), jnp.float32)
    be1 = 0.1 * jax.random.normal(ks[3], (mid_ch,), jnp.float32)
    w2 = 0.1 * jax.random.normal(ks[4], (mid_ch, mid_ch, K_SZ, K_SZ), jnp.float32)
    b2 = 0.1 * jax.random.normal(ks[5], (mid_ch,), jnp.float32)
    g2 = 1.0 + 0.1 * jax.random.normal(ks[6], (mid_ch,), jnp.float32)
    be2 = 0.1 * jax.random.normal(ks[7], (mid_ch,), jnp.float32)
    return (w1, b1, g1, be1, w2, b2, g2, be2)


if __name__ == "__main__":
    mid_ch = 16
    N, H, W = 2, 16, 16

    key = jax.random.PRNGKey(0)
    kx, kp = jax.random.split(key)
    x = jax.random.normal(kx, (N, mid_ch, H, W), jnp.float32)   # NCHW like PyTorch
    params = make_params(kp, mid_ch)

    out = jax.block_until_ready(resnet_block_pallas(x, params))
    ref = jax.block_until_ready(resnet_block_reference(x, params))

    assert out.shape == ref.shape == (N, mid_ch, H, W)
    # bf16 MXU operands with f32 accumulation vs. an f32 reference.
    assert jnp.allclose(out, ref, atol=5e-2, rtol=5e-2), \
        f"max abs err = {jnp.max(jnp.abs(out - ref))}"
    print("KERNEL_OK")
</pallas_src>

<mosaic_0001>
module attributes {stable_mosaic.version = 11 : i64} {
  func.func @resnet_block_kernel(%arg0: memref<32x256xf32, #tpu.memory_space<vmem>>, %arg1: memref<768x256xbf16, #tpu.memory_space<vmem>>, %arg2: memref<1x256xf32, #tpu.memory_space<vmem>>, %arg3: memref<1x256xf32, #tpu.memory_space<vmem>>, %arg4: memref<768x256xbf16, #tpu.memory_space<vmem>>, %arg5: memref<1x256xf32, #tpu.memory_space<vmem>>, %arg6: memref<1x256xf32, #tpu.memory_space<vmem>>, %arg7: memref<256x256xbf16, #tpu.memory_space<vmem>>, %arg8: memref<32x256xf32, #tpu.memory_space<vmem>>) attributes {dimension_semantics = [], scalar_prefetch = 0 : i64, scratch_operands = 0 : i64, tpu.core_type = #tpu.core_type<tc>} {
    %c0 = arith.constant 0 : index
    %c0_0 = arith.constant 0 : index
    %0 = vector.load %arg0[%c0, %c0_0] : memref<32x256xf32, #tpu.memory_space<vmem>>, vector<32x256xf32>
    %c0_1 = arith.constant 0 : index
    %c0_2 = arith.constant 0 : index
    %1 = vector.load %arg7[%c0_1, %c0_2] : memref<256x256xbf16, #tpu.memory_space<vmem>>, vector<256x256xbf16>
    %2 = tpu.iota {dimensions = array<i32: 0>} : vector<32x256xi32>
    %c16_i32 = arith.constant 16 : i32
    %c0_i32 = arith.constant 0 : i32
    %3 = arith.cmpi eq, %c16_i32, %c0_i32 : i32
    %c1_i32 = arith.constant 1 : i32
    %4 = arith.select %3, %c1_i32, %c16_i32 : i32
    %5 = vector.broadcast %4 : i32 to vector<32x256xi32>
    %6 = arith.remsi %2, %5 : vector<32x256xi32>
    %c0_i32_3 = arith.constant 0 : i32
    %7 = vector.broadcast %c0_i32_3 : i32 to vector<32x256xi32>
    %8 = arith.cmpi ne, %6, %7 : vector<32x256xi32>
    %c0_i32_4 = arith.constant 0 : i32
    %9 = vector.broadcast %c0_i32_4 : i32 to vector<32x256xi32>
    %10 = arith.cmpi slt, %6, %9 : vector<32x256xi32>
    %c0_i32_5 = arith.constant 0 : i32
    %11 = arith.cmpi slt, %4, %c0_i32_5 : i32
    %12 = vector.broadcast %11 : i1 to vector<32x256xi1>
    %13 = vector.broadcast %12 : vector<32x256xi1> to vector<32x256xi1>
    %14 = arith.xori %10, %13 : vector<32x256xi1>
    %15 = arith.andi %14, %8 : vector<32x256xi1>
    %16 = vector.broadcast %4 : i32 to vector<32x256xi32>
    %17 = arith.addi %6, %16 : vector<32x256xi32>
    %18 = arith.select %15, %17, %6 : vector<32x256xi1>, vector<32x256xi32>
    %c0_i32_6 = arith.constant 0 : i32
    %19 = vector.broadcast %c0_i32_6 : i32 to vector<32x256xi32>
    %20 = arith.cmpi eq, %18, %19 : vector<32x256xi32>
    %c15_i32 = arith.constant 15 : i32
    %21 = vector.broadcast %c15_i32 : i32 to vector<32x256xi32>
    %22 = arith.cmpi eq, %18, %21 : vector<32x256xi32>
    %c1_i32_7 = arith.constant 1 : i32
    %23 = tpu.dynamic_rotate %0 by %c1_i32_7 dim 0 : vector<32x256xf32>, i32 -> vector<32x256xf32>
    %cst = arith.constant 0.000000e+00 : f32
    %24 = vector.broadcast %cst : f32 to vector<32x256xf32>
    %25 = arith.select %20, %24, %23 : vector<32x256xi1>, vector<32x256xf32>
    %c31_i32 = arith.constant 31 : i32
    %26 = tpu.dynamic_rotate %0 by %c31_i32 dim 0 : vector<32x256xf32>, i32 -> vector<32x256xf32>
    %cst_8 = arith.constant 0.000000e+00 : f32
    %27 = vector.broadcast %cst_8 : f32 to vector<32x256xf32>
    %28 = arith.select %22, %27, %26 : vector<32x256xi1>, vector<32x256xf32>
    %29 = tpu.concatenate %25, %0, %28 in 1 : vector<32x256xf32>, vector<32x256xf32>, vector<32x256xf32> -> vector<32x768xf32>
    %30 = arith.truncf %29 : vector<32x768xf32> to vector<32x768xbf16>
    %c0_9 = arith.constant 0 : index
    %c0_10 = arith.constant 0 : index
    %31 = vector.load %arg1[%c0_9, %c0_10] : memref<768x256xbf16, #tpu.memory_space<vmem>>, vector<768x256xbf16>
    %cst_11 = arith.constant dense<0.000000e+00> : vector<32x256xf32>
    %32 = tpu.matmul %30, %31, %cst_11 {dimension_numbers = #tpu.dot_dimension_numbers<[1], [0], [0], [1], [0, 0, 1, 1], [], []>} : vector<32x768xbf16>, vector<768x256xbf16>, vector<32x256xf32> -> vector<32x256xf32>
    %c0_12 = arith.constant 0 : index
    %c0_13 = arith.constant 0 : index
    %33 = vector.load %arg2[%c0_12, %c0_13] : memref<1x256xf32, #tpu.memory_space<vmem>>, vector<1x256xf32>
    %c0_14 = arith.constant 0 : index
    %c0_15 = arith.constant 0 : index
    %34 = vector.load %arg3[%c0_14, %c0_15] : memref<1x256xf32, #tpu.memory_space<vmem>>, vector<1x256xf32>
    %cst_16 = arith.constant dense<0.000000e+00> : vector<256xf32>
    %35 = vector.multi_reduction <add>, %32, %cst_16 [0] : vector<32x256xf32> to vector<256xf32>
    %36 = vector.shape_cast %35 : vector<256xf32> to vector<1x256xf32>
    %37 = arith.mulf %32, %32 : vector<32x256xf32>
    %cst_17 = arith.constant dense<0.000000e+00> : vector<256xf32>
    %38 = vector.multi_reduction <add>, %37, %cst_17 [0] : vector<32x256xf32> to vector<256xf32>
    %39 = vector.shape_cast %38 : vector<256xf32> to vector<1x256xf32>
    %40 = tpu.concatenate %36, %39 in 0 : vector<1x256xf32>, vector<1x256xf32> -> vector<2x256xf32>
    %41 = arith.truncf %40 : vector<2x256xf32> to vector<2x256xbf16>
    %cst_18 = arith.constant dense<0.000000e+00> : vector<2x256xf32>
    %42 = tpu.matmul %41, %1, %cst_18 {dimension_numbers = #tpu.dot_dimension_numbers<[1], [0], [0], [1], [0, 0, 1, 1], [], []>} : vector<2x256xbf16>, vector<256x256xbf16>, vector<2x256xf32> -> vector<2x256xf32>
    %43 = vector.extract_strided_slice %42 {offsets = [0, 0], sizes = [1, 256], strides = [1, 1]} : vector<2x256xf32> to vector<1x256xf32>
    %44 = vector.extract_strided_slice %42 {offsets = [1, 0], sizes = [1, 256], strides = [1, 1]} : vector<2x256xf32> to vector<1x256xf32>
    %45 = arith.mulf %43, %43 : vector<1x256xf32>
    %46 = arith.subf %44, %45 : vector<1x256xf32>
    %47 = vector.broadcast %43 : vector<1x256xf32> to vector<32x256xf32>
    %48 = arith.subf %32, %47 : vector<32x256xf32>
    %cst_19 = arith.constant 9.99999974E-6 : f32
    %49 = vector.broadcast %cst_19 : f32 to vector<1x256xf32>
    %50 = arith.addf %46, %49 : vector<1x256xf32>
    %51 = math.rsqrt %50 : vector<1x256xf32>
    %52 = vector.broadcast %51 : vector<1x256xf32> to vector<32x256xf32>
    %53 = arith.mulf %48, %52 : vector<32x256xf32>
    %54 = vector.broadcast %33 : vector<1x256xf32> to vector<32x256xf32>
    %55 = arith.mulf %53, %54 : vector<32x256xf32>
    %56 = vector.broadcast %34 : vector<1x256xf32> to vector<32x256xf32>
    %57 = arith.addf %55, %56 : vector<32x256xf32>
    %cst_20 = arith.constant 0.000000e+00 : f32
    %58 = vector.broadcast %cst_20 : f32 to vector<32x256xf32>
    %59 = arith.maximumf %57, %58 : vector<32x256xf32>
    %c1_i32_21 = arith.constant 1 : i32
    %60 = tpu.dynamic_rotate %59 by %c1_i32_21 dim 0 : vector<32x256xf32>, i32 -> vector<32x256xf32>
    %cst_22 = arith.constant 0.000000e+00 : f32
    %61 = vector.broadcast %cst_22 : f32 to vector<32x256xf32>
    %62 = arith.select %20, %61, %60 : vector<32x256xi1>, vector<32x256xf32>
    %c31_i32_23 = arith.constant 31 : i32
    %63 = tpu.dynamic_rotate %59 by %c31_i32_23 dim 0 : vector<32x256xf32>, i32 -> vector<32x256xf32>
    %cst_24 = arith.constant 0.000000e+00 : f32
    %64 = vector.broadcast %cst_24 : f32 to vector<32x256xf32>
    %65 = arith.select %22, %64, %63 : vector<32x256xi1>, vector<32x256xf32>
    %66 = tpu.concatenate %62, %59, %65 in 1 : vector<32x256xf32>, vector<32x256xf32>, vector<32x256xf32> -> vector<32x768xf32>
    %67 = arith.truncf %66 : vector<32x768xf32> to vector<32x768xbf16>
    %c0_25 = arith.constant 0 : index
    %c0_26 = arith.constant 0 : index
    %68 = vector.load %arg4[%c0_25, %c0_26] : memref<768x256xbf16, #tpu.memory_space<vmem>>, vector<768x256xbf16>
    %cst_27 = arith.constant dense<0.000000e+00> : vector<32x256xf32>
    %69 = tpu.matmul %67, %68, %cst_27 {dimension_numbers = #tpu.dot_dimension_numbers<[1], [0], [0], [1], [0, 0, 1, 1], [], []>} : vector<32x768xbf16>, vector<768x256xbf16>, vector<32x256xf32> -> vector<32x256xf32>
    %c0_28 = arith.constant 0 : index
    %c0_29 = arith.constant 0 : index
    %70 = vector.load %arg5[%c0_28, %c0_29] : memref<1x256xf32, #tpu.memory_space<vmem>>, vector<1x256xf32>
    %c0_30 = arith.constant 0 : index
    %c0_31 = arith.constant 0 : index
    %71 = vector.load %arg6[%c0_30, %c0_31] : memref<1x256xf32, #tpu.memory_space<vmem>>, vector<1x256xf32>
    %cst_32 = arith.constant dense<0.000000e+00> : vector<256xf32>
    %72 = vector.multi_reduction <add>, %69, %cst_32 [0] : vector<32x256xf32> to vector<256xf32>
    %73 = vector.shape_cast %72 : vector<256xf32> to vector<1x256xf32>
    %74 = arith.mulf %69, %69 : vector<32x256xf32>
    %cst_33 = arith.constant dense<0.000000e+00> : vector<256xf32>
    %75 = vector.multi_reduction <add>, %74, %cst_33 [0] : vector<32x256xf32> to vector<256xf32>
    %76 = vector.shape_cast %75 : vector<256xf32> to vector<1x256xf32>
    %77 = tpu.concatenate %73, %76 in 0 : vector<1x256xf32>, vector<1x256xf32> -> vector<2x256xf32>
    %78 = arith.truncf %77 : vector<2x256xf32> to vector<2x256xbf16>
    %cst_34 = arith.constant dense<0.000000e+00> : vector<2x256xf32>
    %79 = tpu.matmul %78, %1, %cst_34 {dimension_numbers = #tpu.dot_dimension_numbers<[1], [0], [0], [1], [0, 0, 1, 1], [], []>} : vector<2x256xbf16>, vector<256x256xbf16>, vector<2x256xf32> -> vector<2x256xf32>
    %80 = vector.extract_strided_slice %79 {offsets = [0, 0], sizes = [1, 256], strides = [1, 1]} : vector<2x256xf32> to vector<1x256xf32>
    %81 = vector.extract_strided_slice %79 {offsets = [1, 0], sizes = [1, 256], strides = [1, 1]} : vector<2x256xf32> to vector<1x256xf32>
    %82 = arith.mulf %80, %80 : vector<1x256xf32>
    %83 = arith.subf %81, %82 : vector<1x256xf32>
    %84 = vector.broadcast %80 : vector<1x256xf32> to vector<32x256xf32>
    %85 = arith.subf %69, %84 : vector<32x256xf32>
    %cst_35 = arith.constant 9.99999974E-6 : f32
    %86 = vector.broadcast %cst_35 : f32 to vector<1x256xf32>
    %87 = arith.addf %83, %86 : vector<1x256xf32>
    %88 = math.rsqrt %87 : vector<1x256xf32>
    %89 = vector.broadcast %88 : vector<1x256xf32> to vector<32x256xf32>
    %90 = arith.mulf %85, %89 : vector<32x256xf32>
    %91 = vector.broadcast %70 : vector<1x256xf32> to vector<32x256xf32>
    %92 = arith.mulf %90, %91 : vector<32x256xf32>
    %93 = vector.broadcast %71 : vector<1x256xf32> to vector<32x256xf32>
    %94 = arith.addf %92, %93 : vector<32x256xf32>
    %95 = arith.addf %0, %94 : vector<32x256xf32>
    %cst_36 = arith.constant 0.000000e+00 : f32
    %96 = vector.broadcast %cst_36 : f32 to vector<32x256xf32>
    %97 = arith.maximumf %95, %96 : vector<32x256xf32>
    %c0_37 = arith.constant 0 : index
    %c0_38 = arith.constant 0 : index
    %98 = vector.load %arg8[%c0_37, %c0_38] : memref<32x256xf32, #tpu.memory_space<vmem>>, vector<32x256xf32>
    tpu.vector_store %arg8[%c0_37, %c0_38], %97 {strides = array<i32>} : memref<32x256xf32, #tpu.memory_space<vmem>>, vector<32x256xf32>,
    return
  }
}

</mosaic_0001>

<llo_original>
// kernel: tpu_custom_call.1
$region0: #{tpu_custom_call.1}
  #allocation0 [shape = 'u32[]', space=smem, size = 0x4, offset = 0x4, fixed_abs, tag = 'smem constant byte address 0x4 - core index']
  #allocation1 [shape = 'u32[144,128]{1,0:T(1,128)}', space=vmem, size = 0x12000, scoped, tag = 'internal scratch']
  %s0 = inlined_call_operand.hbm [shape: f32[32,256], index: 0, kind: input, shape index: {}]
  %s1 = inlined_call_operand.hbm [shape: bf16[768,256], index: 1, kind: input, shape index: {}]
  %s2 = inlined_call_operand.vmem [shape: f32[1,256], index: 2, kind: input, shape index: {}]
  %s3 = inlined_call_operand.vmem [shape: f32[1,256], index: 3, kind: input, shape index: {}]
  %s4 = inlined_call_operand.hbm [shape: bf16[768,256], index: 4, kind: input, shape index: {}]
  %s5 = inlined_call_operand.vmem [shape: f32[1,256], index: 5, kind: input, shape index: {}]
  %s6 = inlined_call_operand.vmem [shape: f32[1,256], index: 6, kind: input, shape index: {}]
  %s7 = inlined_call_operand.hbm [shape: bf16[256,256], index: 7, kind: input, shape index: {}]
  %s8 = inlined_call_operand.hbm [shape: f32[32,256], index: 8, kind: output, shape index: {}]
  %s9 = sld [smem:[#allocation0]]
  $region58: #{tpu_custom_call.1} parent=0
    _
  %s11 = ssub.s32 1, %s9
  %s12 = scalar_select 0, %s11, %s9
  $region1: #{tpu_custom_call.1} parent=0
    #allocation2 [shape = 'u8[32768]{0}', space=vmem, size = 0x8000, scoped, tag = 'input window, operand 0, single buffered']
    #allocation3 [shape = 's32[1]{0}', space=sflag, size = 0x4, scoped, tag = 'scoped memory for tpu_custom_call.1']
    #allocation4 [shape = 's32[1]{0}', space=sflag, size = 0x4, scoped, tag = 'scoped memory for tpu_custom_call.1']
    #allocation5 [shape = 'u8[393216]{0}', space=vmem, size = 0x60000, scoped, tag = 'input window, operand 1, single buffered']
    #allocation6 [shape = 's32[1]{0}', space=sflag, size = 0x4, scoped, tag = 'scoped memory for tpu_custom_call.1']
    #allocation7 [shape = 'u8[393216]{0}', space=vmem, size = 0x60000, scoped, tag = 'input window, operand 4, single buffered']
    #allocation8 [shape = 'u8[131072]{0}', space=vmem, size = 0x20000, scoped, tag = 'input window, operand 7, single buffered']
    #allocation9 [shape = 's32[1]{0}', space=sflag, size = 0x4, scoped, tag = 'scoped memory for tpu_custom_call.1']
    #allocation10 [shape = 'u8[32768]{0}', space=vmem, size = 0x8000, scoped, tag = 'output window, operand 0, single buffered']
    %13 = vsyncpa [#allocation3], 0
    %14 = vsyncpa [#allocation6], 0
    %15 = vsyncpa [#allocation9], 0
    %16 = vsyncpa [#allocation4], 0
    // Predicated region
    $region2: #{tpu_custom_call.1} parent=1 // pred_check
      _
    $region3: #{tpu_custom_call.1} parent=1 // pred_check_branch
      %18 = sbr.rel (0) target = $region5
    $region4: #{tpu_custom_call.1} parent=1 // pred_region
      %s20 = ssub.s32 1024, 1024
      %21 = vsyncadd [#allocation3], %s20
      %s22 = sshll.u32 [#allocation2], 4
      %s23 = int_to_ptr.vmem [resolvable:$true] %s22
      %28 = dma.hbm_to_vmem [thread:$0]  %s0, 1024, %s23, [#allocation3], 256, 256, 16
    $region5: #{tpu_custom_call.1} parent=1 // pred_fallthru
      _
    // Predicated region
    $region6: #{tpu_custom_call.1} parent=1 // pred_check
      _
    $region7: #{tpu_custom_call.1} parent=1 // pred_check_branch
      %30 = sbr.rel (0) target = $region9
    $region8: #{tpu_custom_call.1} parent=1 // pred_region
      %s32 = ssub.s32 12288, 12288
      %33 = vsyncadd [#allocation6], %s32
      %s34 = sshll.u32 [#allocation5], 4
      %s35 = int_to_ptr.vmem [resolvable:$true] %s34
      %40 = dma.hbm_to_vmem [thread:$0]  %s1, 12288, %s35, [#allocation6], 128, 128, 8
    $region9: #{tpu_custom_call.1} parent=1 // pred_fallthru
      _
    // Predicated region
    $region10: #{tpu_custom_call.1} parent=1 // pred_check
      _
    $region11: #{tpu_custom_call.1} parent=1 // pred_check_branch
      %42 = sbr.rel (0) target = $region13
    $region12: #{tpu_custom_call.1} parent=1 // pred_region
      _
    $region13: #{tpu_custom_call.1} parent=1 // pred_fallthru
      _
    // Predicated region
    $region14: #{tpu_custom_call.1} parent=1 // pred_check
      _
    $region15: #{tpu_custom_call.1} parent=1 // pred_check_branch
      %44 = sbr.rel (0) target = $region17
    $region16: #{tpu_custom_call.1} parent=1 // pred_region
      _
    $region17: #{tpu_custom_call.1} parent=1 // pred_fallthru
      _
    // Predicated region
    $region18: #{tpu_custom_call.1} parent=1 // pred_check
      _
    $region19: #{tpu_custom_call.1} parent=1 // pred_check_branch
      %46 = sbr.rel (0) target = $region21
    $region20: #{tpu_custom_call.1} parent=1 // pred_region
      %s48 = ssub.s32 12288, 12288
      %49 = vsyncadd [#allocation6], %s48
      %s50 = sshll.u32 [#allocation7], 4
      %s51 = int_to_ptr.vmem [resolvable:$true] %s50
      %56 = dma.hbm_to_vmem [thread:$0]  %s4, 12288, %s51, [#allocation6], 128, 128, 8
    $region21: #{tpu_custom_call.1} parent=1 // pred_fallthru
      _
    // Predicated region
    $region22: #{tpu_custom_call.1} parent=1 // pred_check
      _
    $region23: #{tpu_custom_call.1} parent=1 // pred_check_branch
      %58 = sbr.rel (0) target = $region25
    $region24: #{tpu_custom_call.1} parent=1 // pred_region
      _
    $region25: #{tpu_custom_call.1} parent=1 // pred_fallthru
      _
    // Predicated region
    $region26: #{tpu_custom_call.1} parent=1 // pred_check
      _
    $region27: #{tpu_custom_call.1} parent=1 // pred_check_branch
      %60 = sbr.rel (0) target = $region29
    $region28: #{tpu_custom_call.1} parent=1 // pred_region
      _
    $region29: #{tpu_custom_call.1} parent=1 // pred_fallthru
      _
    // Predicated region
    $region30: #{tpu_custom_call.1} parent=1 // pred_check
      _
    $region31: #{tpu_custom_call.1} parent=1 // pred_check_branch
      %62 = sbr.rel (0) target = $region33
    $region32: #{tpu_custom_call.1} parent=1 // pred_region
      %s64 = ssub.s32 4096, 4096
      %65 = vsyncadd [#allocation9], %s64
      %s66 = sshll.u32 [#allocation8], 4
      %s67 = int_to_ptr.vmem [resolvable:$true] %s66
      %72 = dma.hbm_to_vmem [thread:$0]  %s7, 4096, %s67, [#allocation9], 128, 128, 8
    $region33: #{tpu_custom_call.1} parent=1 // pred_fallthru
      _
    // Predicated region
    $region34: #{tpu_custom_call.1} parent=1 // pred_check
      _
    $region35: #{tpu_custom_call.1} parent=1 // pred_check_branch
      %74 = sbr.rel (0) target = $region37
    $region36: #{tpu_custom_call.1} parent=1 // pred_region
      %75 = dma.done [#allocation3], 1024
    $region37: #{tpu_custom_call.1} parent=1 // pred_fallthru
      _
    // Predicated region
    $region38: #{tpu_custom_call.1} parent=1 // pred_check
      _
    $region39: #{tpu_custom_call.1} parent=1 // pred_check_branch
      %77 = sbr.rel (0) target = $region41
    $region40: #{tpu_custom_call.1} parent=1 // pred_region
      %78 = dma.done [#allocation6], 12288
    $region41: #{tpu_custom_call.1} parent=1 // pred_fallthru
      _
    // Predicated region
    $region42: #{tpu_custom_call.1} parent=1 // pred_check
      _
    $region43: #{tpu_custom_call.1} parent=1 // pred_check_branch
      %80 = sbr.rel (0) target = $region45
    $region44: #{tpu_custom_call.1} parent=1 // pred_region
      %81 = dma.done [#allocation6], 12288
    $region45: #{tpu_custom_call.1} parent=1 // pred_fallthru
      _
    // Predicated region
    $region46: #{tpu_custom_call.1} parent=1 // pred_check
      _
    $region47: #{tpu_custom_call.1} parent=1 // pred_check_branch
      %83 = sbr.rel (0) target = $region49
    $region48: #{tpu_custom_call.1} parent=1 // pred_region
      %84 = dma.done [#allocation9], 4096
    $region49: #{tpu_custom_call.1} parent=1 // pred_fallthru
      _
    %v85 = vld [vmem:[#allocation2] sm:$0xff]
    %v86 = vld [vmem:[#allocation2 + $0x8] sm:$0xff]
    %v87 = vld [vmem:[#allocation2 + $0x10] sm:$0xff]
    %v88 = vld [vmem:[#allocation2 + $0x18] sm:$0xff]
    %v89 = vld [vmem:[#allocation2 + $0x20] sm:$0xff]
    %v90 = vld [vmem:[#allocation2 + $0x28] sm:$0xff]
    %v91 = vld [vmem:[#allocation2 + $0x30] sm:$0xff]
    %v92 = vld [vmem:[#allocation2 + $0x38] sm:$0xff]
    %v93 = vld [vmem:[#allocation8] sm:$0xff]
    %v94 = vld [vmem:[#allocation8 + $0x8] sm:$0xff]
    %v95 = vld [vmem:[#allocation8 + $0x10] sm:$0xff]
    %v96 = vld [vmem:[#allocation8 + $0x18] sm:$0xff]
    %v97 = vld [vmem:[#allocation8 + $0x20] sm:$0xff]
    %v98 = vld [vmem:[#allocation8 + $0x28] sm:$0xff]
    %v99 = vld [vmem:[#allocation8 + $0x30] sm:$0xff]
    %v100 = vld [vmem:[#allocation8 + $0x38] sm:$0xff]
    %v101 = vld [vmem:[#allocation8 + $0x40] sm:$0xff]
    %v102 = vld [vmem:[#allocation8 + $0x48] sm:$0xff]
    %v103 = vld [vmem:[#allocation8 + $0x50] sm:$0xff]
    %v104 = vld [vmem:[#allocation8 + $0x58] sm:$0xff]
    %v105 = vld [vmem:[#allocation8 + $0x60] sm:$0xff]
    %v106 = vld [vmem:[#allocation8 + $0x68] sm:$0xff]
    %v107 = vld [vmem:[#allocation8 + $0x70] sm:$0xff]
    %v108 = vld [vmem:[#allocation8 + $0x78] sm:$0xff]
    %v109 = vld [vmem:[#allocation8 + $0x80] sm:$0xff]
    %v110 = vld [vmem:[#allocation8 + $0x88] sm:$0xff]
    %v111 = vld [vmem:[#allocation8 + $0x90] sm:$0xff]
    %v112 = vld [vmem:[#allocation8 + $0x98] sm:$0xff]
    %v113 = vld [vmem:[#allocation8 + $0xa0] sm:$0xff]
    %v114 = vld [vmem:[#allocation8 + $0xa8] sm:$0xff]
    %v115 = vld [vmem:[#allocation8 + $0xb0] sm:$0xff]
    %v116 = vld [vmem:[#allocation8 + $0xb8] sm:$0xff]
    %v117 = vld [vmem:[#allocation8 + $0xc0] sm:$0xff]
    %v118 = vld [vmem:[#allocation8 + $0xc8] sm:$0xff]
    %v119 = vld [vmem:[#allocation8 + $0xd0] sm:$0xff]
    %v120 = vld [vmem:[#allocation8 + $0xd8] sm:$0xff]
    %v121 = vld [vmem:[#allocation8 + $0xe0] sm:$0xff]
    %v122 = vld [vmem:[#allocation8 + $0xe8] sm:$0xff]
    %v123 = vld [vmem:[#allocation8 + $0xf0] sm:$0xff]
    %v124 = vld [vmem:[#allocation8 + $0xf8] sm:$0xff]
    %v125 = vlaneseq
    %v126 = vshrl.u32 %v125, 7
    %v127 = vadd.s32 %v126, 8
    %v128 = vadd.s32 %v126, 16
    %v129 = vadd.s32 %v126, 24
    %vm130 = vcmp.lt.s32.totalorder %v126, 0
    %v131 = vsub.s32 0, %v126
    %v132 = vsel %vm130, %v131, %v126
    %v133 = vshrl.u32 %v132, 4
    %v134 = vand.u32 %v132, 15
    %v135 = vsub.s32 0, %v134
    %v136 = vsel %vm130, %v135, %v134
    %vm137 = vcmp.lt.s32.totalorder %v127, 0
    %v138 = vsub.s32 0, %v127
    %v139 = vsel %vm137, %v138, %v127
    %v140 = vshrl.u32 %v139, 4
    %v141 = vand.u32 %v139, 15
    %v142 = vsub.s32 0, %v141
    %v143 = vsel %vm137, %v142, %v141
    %vm144 = vcmp.lt.s32.totalorder %v128, 0
    %v145 = vsub.s32 0, %v128
    %v146 = vsel %vm144, %v145, %v128
    %v147 = vshrl.u32 %v146, 4
    %v148 = vand.u32 %v146, 15
    %v149 = vsub.s32 0, %v148
    %v150 = vsel %vm144, %v149, %v148
    %vm151 = vcmp.lt.s32.totalorder %v129, 0
    %v152 = vsub.s32 0, %v129
    %v153 = vsel %vm151, %v152, %v129
    %v154 = vshrl.u32 %v153, 4
    %v155 = vand.u32 %v153, 15
    %v156 = vsub.s32 0, %v155
    %v157 = vsel %vm151, %v156, %v155
    %vm158 = vcmp.ne.s32.totalorder %v136, 0
    %vm159 = vcmp.ne.s32.totalorder %v143, 0
    %vm160 = vcmp.ne.s32.totalorder %v150, 0
    %vm161 = vcmp.ne.s32.totalorder %v157, 0
    %vm162 = vcmp.lt.s32.totalorder %v136, 0
    %vm163 = vcmp.lt.s32.totalorder %v143, 0
    %vm164 = vcmp.lt.s32.totalorder %v150, 0
    %vm165 = vcmp.lt.s32.totalorder %v157, 0
    %vm166 = vmand %vm162, %vm158
    %vm167 = vmand %vm163, %vm159
    %vm168 = vmand %vm164, %vm160
    %vm169 = vmand %vm165, %vm161
    %v170 = vadd.s32 %v136, 16
    %v171 = vadd.s32 %v143, 16
    %v172 = vadd.s32 %v150, 16
    %v173 = vadd.s32 %v157, 16
    %v174 = vsel %vm166, %v170, %v136
    %v175 = vsel %vm167, %v171, %v143
    %v176 = vsel %vm168, %v172, %v150
    %v177 = vsel %vm169, %v173, %v157
    %vm178 = vcmp.eq.s32.totalorder %v174, 0
    %vm179 = vcmp.eq.s32.totalorder %v175, 0
    %vm180 = vcmp.eq.s32.totalorder %v176, 0
    %vm181 = vcmp.eq.s32.totalorder %v177, 0
    %vm182 = vcmp.eq.s32.totalorder %v174, 15
    %vm183 = vcmp.eq.s32.totalorder %v175, 15
    %vm184 = vcmp.eq.s32.totalorder %v176, 15
    %vm185 = vcmp.eq.s32.totalorder %v177, 15
    %v186 = vrot.slane %v85, 7
    %v187 = vrot.slane %v86, 7
    %v188 = vrot.slane %v87, 7
    %v189 = vrot.slane %v88, 7
    %v190 = vrot.slane %v89, 7
    %v191 = vrot.slane %v90, 7
    %v192 = vrot.slane %v91, 7
    %v193 = vrot.slane %v92, 7
    %vm194 = vcmp.lt.s32.totalorder %v126, 1
    %v195 = vsel %vm194, %v190, %v192
    %v196 = vsel %vm194, %v191, %v193
    %v197 = vsel %vm194, %v188, %v190
    %v198 = vsel %vm194, %v189, %v191
    %v199 = vsel %vm194, %v186, %v188
    %v200 = vsel %vm194, %v187, %v189
    %v201 = vsel %vm194, %v192, %v186
    %v202 = vsel %vm194, %v193, %v187
    %v203 = vsel %vm178, 0.0, %v201
    %v204 = vsel %vm178, 0.0, %v202
    %v205 = vsel %vm179, 0.0, %v199
    %v206 = vsel %vm179, 0.0, %v200
    %v207 = vsel %vm180, 0.0, %v197
    %v208 = vsel %vm180, 0.0, %v198
    %v209 = vsel %vm181, 0.0, %v195
    %v210 = vsel %vm181, 0.0, %v196
    %v211 = vrot.slane %v85, 1
    %v212 = vrot.slane %v86, 1
    %v213 = vrot.slane %v87, 1
    %v214 = vrot.slane %v88, 1
    %v215 = vrot.slane %v89, 1
    %v216 = vrot.slane %v90, 1
    %v217 = vrot.slane %v91, 1
    %v218 = vrot.slane %v92, 1
    %vm219 = vcmp.lt.s32.totalorder %v126, 7
    %v220 = vsel %vm219, %v215, %v217
    %v221 = vsel %vm219, %v216, %v218
    %v222 = vsel %vm219, %v213, %v215
    %v223 = vsel %vm219, %v214, %v216
    %v224 = vsel %vm219, %v211, %v213
    %v225 = vsel %vm219, %v212, %v214
    %v226 = vsel %vm219, %v217, %v211
    %v227 = vsel %vm219, %v218, %v212
    %v228 = vsel %vm182, 0.0, %v224
    %v229 = vsel %vm182, 0.0, %v225
    %v230 = vsel %vm183, 0.0, %v222
    %v231 = vsel %vm183, 0.0, %v223
    %v232 = vsel %vm184, 0.0, %v220
    %v233 = vsel %vm184, 0.0, %v221
    %v234 = vsel %vm185, 0.0, %v226
    %v235 = vsel %vm185, 0.0, %v227
    %v236 = vpack.c.bf16 %v205, %v203
    %v237 = vpack.c.bf16 %v206, %v204
    %v238 = vpack.c.bf16 %v87, %v85
    %v239 = vpack.c.bf16 %v88, %v86
    %v240 = vpack.c.bf16 %v230, %v228
    %v241 = vpack.c.bf16 %v231, %v229
    %v242 = vpack.c.bf16 %v209, %v207
    %v243 = vpack.c.bf16 %v210, %v208
    %v244 = vpack.c.bf16 %v91, %v89
    %v245 = vpack.c.bf16 %v92, %v90
    %v246 = vpack.c.bf16 %v234, %v232
    %v247 = vpack.c.bf16 %v235, %v233
    %v248 = vld [vmem:[#allocation5] sm:$0xff]
    %v249 = vld [vmem:[#allocation5 + $0x8] sm:$0xff]
    %v250 = vld [vmem:[#allocation5 + $0x10] sm:$0xff]
    %v251 = vld [vmem:[#allocation5 + $0x18] sm:$0xff]
    %v252 = vld [vmem:[#allocation5 + $0x20] sm:$0xff]
    %v253 = vld [vmem:[#allocation5 + $0x28] sm:$0xff]
    %v254 = vld [vmem:[#allocation5 + $0x30] sm:$0xff]
    %v255 = vld [vmem:[#allocation5 + $0x38] sm:$0xff]
    %v256 = vld [vmem:[#allocation5 + $0x40] sm:$0xff]
    %v257 = vld [vmem:[#allocation5 + $0x48] sm:$0xff]
    %v258 = vld [vmem:[#allocation5 + $0x50] sm:$0xff]
    %v259 = vld [vmem:[#allocation5 + $0x58] sm:$0xff]
    %v260 = vld [vmem:[#allocation5 + $0x60] sm:$0xff]
    %v261 = vld [vmem:[#allocation5 + $0x68] sm:$0xff]
    %v262 = vld [vmem:[#allocation5 + $0x70] sm:$0xff]
    %v263 = vld [vmem:[#allocation5 + $0x78] sm:$0xff]
    %v264 = vld [vmem:[#allocation5 + $0x80] sm:$0xff]
    %v265 = vld [vmem:[#allocation5 + $0x88] sm:$0xff]
    %v266 = vld [vmem:[#allocation5 + $0x90] sm:$0xff]
    %v267 = vld [vmem:[#allocation5 + $0x98] sm:$0xff]
    %v268 = vld [vmem:[#allocation5 + $0xa0] sm:$0xff]
    %v269 = vld [vmem:[#allocation5 + $0xa8] sm:$0xff]
    %v270 = vld [vmem:[#allocation5 + $0xb0] sm:$0xff]
    %v271 = vld [vmem:[#allocation5 + $0xb8] sm:$0xff]
    %v272 = vld [vmem:[#allocation5 + $0xc0] sm:$0xff]
    %v273 = vld [vmem:[#allocation5 + $0xc8] sm:$0xff]
    %v274 = vld [vmem:[#allocation5 + $0xd0] sm:$0xff]
    %v275 = vld [vmem:[#allocation5 + $0xd8] sm:$0xff]
    %v276 = vld [vmem:[#allocation5 + $0xe0] sm:$0xff]
    %v277 = vld [vmem:[#allocation5 + $0xe8] sm:$0xff]
    %v278 = vld [vmem:[#allocation5 + $0xf0] sm:$0xff]
    %v279 = vld [vmem:[#allocation5 + $0xf8] sm:$0xff]
    %v280 = vld [vmem:[#allocation5 + $0x100] sm:$0xff]
    %v281 = vld [vmem:[#allocation5 + $0x108] sm:$0xff]
    %v282 = vld [vmem:[#allocation5 + $0x110] sm:$0xff]
    %v283 = vld [vmem:[#allocation5 + $0x118] sm:$0xff]
    %v284 = vld [vmem:[#allocation5 + $0x120] sm:$0xff]
    %v285 = vld [vmem:[#allocation5 + $0x128] sm:$0xff]
    %v286 = vld [vmem:[#allocation5 + $0x130] sm:$0xff]
    %v287 = vld [vmem:[#allocation5 + $0x138] sm:$0xff]
    %v288 = vld [vmem:[#allocation5 + $0x140] sm:$0xff]
    %v289 = vld [vmem:[#allocation5 + $0x148] sm:$0xff]
    %v290 = vld [vmem:[#allocation5 + $0x150] sm:$0xff]
    %v291 = vld [vmem:[#allocation5 + $0x158] sm:$0xff]
    %v292 = vld [vmem:[#allocation5 + $0x160] sm:$0xff]
    %v293 = vld [vmem:[#allocation5 + $0x168] sm:$0xff]
    %v294 = vld [vmem:[#allocation5 + $0x170] sm:$0xff]
    %v295 = vld [vmem:[#allocation5 + $0x178] sm:$0xff]
    %v296 = vld [vmem:[#allocation5 + $0x180] sm:$0xff]
    %v297 = vld [vmem:[#allocation5 + $0x188] sm:$0xff]
    %v298 = vld [vmem:[#allocation5 + $0x190] sm:$0xff]
    %v299 = vld [vmem:[#allocation5 + $0x198] sm:$0xff]
    %v300 = vld [vmem:[#allocation5 + $0x1a0] sm:$0xff]
    %v301 = vld [vmem:[#allocation5 + $0x1a8] sm:$0xff]
    %v302 = vld [vmem:[#allocation5 + $0x1b0] sm:$0xff]
    %v303 = vld [vmem:[#allocation5 + $0x1b8] sm:$0xff]
    %v304 = vld [vmem:[#allocation5 + $0x1c0] sm:$0xff]
    %v305 = vld [vmem:[#allocation5 + $0x1c8] sm:$0xff]
    %v306 = vld [vmem:[#allocation5 + $0x1d0] sm:$0xff]
    %v307 = vld [vmem:[#allocation5 + $0x1d8] sm:$0xff]
    %v308 = vld [vmem:[#allocation5 + $0x1e0] sm:$0xff]
    %v309 = vld [vmem:[#allocation5 + $0x1e8] sm:$0xff]
    %v310 = vld [vmem:[#allocation5 + $0x1f0] sm:$0xff]
    %v311 = vld [vmem:[#allocation5 + $0x1f8] sm:$0xff]
    %v312 = vld [vmem:[#allocation5 + $0x200] sm:$0xff]
    %v313 = vld [vmem:[#allocation5 + $0x208] sm:$0xff]
    %v314 = vld [vmem:[#allocation5 + $0x210] sm:$0xff]
    %v315 = vld [vmem:[#allocation5 + $0x218] sm:$0xff]
    %v316 = vld [vmem:[#allocation5 + $0x220] sm:$0xff]
    %v317 = vld [vmem:[#allocation5 + $0x228] sm:$0xff]
    %v318 = vld [vmem:[#allocation5 + $0x230] sm:$0xff]
    %v319 = vld [vmem:[#allocation5 + $0x238] sm:$0xff]
    %v320 = vld [vmem:[#allocation5 + $0x240] sm:$0xff]
    %v321 = vld [vmem:[#allocation5 + $0x248] sm:$0xff]
    %v322 = vld [vmem:[#allocation5 + $0x250] sm:$0xff]
    %v323 = vld [vmem:[#allocation5 + $0x258] sm:$0xff]
    %v324 = vld [vmem:[#allocation5 + $0x260] sm:$0xff]
    %v325 = vld [vmem:[#allocation5 + $0x268] sm:$0xff]
    %v326 = vld [vmem:[#allocation5 + $0x270] sm:$0xff]
    %v327 = vld [vmem:[#allocation5 + $0x278] sm:$0xff]
    %v328 = vld [vmem:[#allocation5 + $0x280] sm:$0xff]
    %v329 = vld [vmem:[#allocation5 + $0x288] sm:$0xff]
    %v330 = vld [vmem:[#allocation5 + $0x290] sm:$0xff]
    %v331 = vld [vmem:[#allocation5 + $0x298] sm:$0xff]
    %v332 = vld [vmem:[#allocation5 + $0x2a0] sm:$0xff]
    %v333 = vld [vmem:[#allocation5 + $0x2a8] sm:$0xff]
    %v334 = vld [vmem:[#allocation5 + $0x2b0] sm:$0xff]
    %v335 = vld [vmem:[#allocation5 + $0x2b8] sm:$0xff]
    %v336 = vld [vmem:[#allocation5 + $0x2c0] sm:$0xff]
    %v337 = vld [vmem:[#allocation5 + $0x2c8] sm:$0xff]
    %v338 = vld [vmem:[#allocation5 + $0x2d0] sm:$0xff]
    %v339 = vld [vmem:[#allocation5 + $0x2d8] sm:$0xff]
    %v340 = vld [vmem:[#allocation5 + $0x2e0] sm:$0xff]
    %v341 = vld [vmem:[#allocation5 + $0x2e8] sm:$0xff]
    %v342 = vld [vmem:[#allocation5 + $0x2f0] sm:$0xff]
    %v343 = vld [vmem:[#allocation5 + $0x2f8] sm:$0xff]
    %v440 = vunpack.c.l.b16 %v248
    %v441 = vunpack.c.h.b16 %v248
    %v442 = vunpack.c.l.b16 %v249
    %v443 = vunpack.c.h.b16 %v249
    %v444 = vunpack.c.l.b16 %v250
    %v445 = vunpack.c.h.b16 %v250
    %v446 = vunpack.c.l.b16 %v251
    %v447 = vunpack.c.h.b16 %v251
    %v448 = vunpack.c.l.b16 %v252
    %v449 = vunpack.c.h.b16 %v252
    %v450 = vunpack.c.l.b16 %v253
    %v451 = vunpack.c.h.b16 %v253
    %v452 = vunpack.c.l.b16 %v254
    %v453 = vunpack.c.h.b16 %v254
    %v454 = vunpack.c.l.b16 %v255
    %v455 = vunpack.c.h.b16 %v255
    %v456 = vunpack.c.l.b16 %v256
    %v457 = vunpack.c.h.b16 %v256
    %v458 = vunpack.c.l.b16 %v257
    %v459 = vunpack.c.h.b16 %v257
    %v460 = vunpack.c.l.b16 %v258
    %v461 = vunpack.c.h.b16 %v258
    %v462 = vunpack.c.l.b16 %v259
    %v463 = vunpack.c.h.b16 %v259
    %v464 = vunpack.c.l.b16 %v260
    %v465 = vunpack.c.h.b16 %v260
    %v466 = vunpack.c.l.b16 %v261
    %v467 = vunpack.c.h.b16 %v261
    %v468 = vunpack.c.l.b16 %v262
    %v469 = vunpack.c.h.b16 %v262
    %v470 = vunpack.c.l.b16 %v263
    %v471 = vunpack.c.h.b16 %v263
    %v472 = vunpack.c.l.b16 %v264
    %v473 = vunpack.c.h.b16 %v264
    %v474 = vunpack.c.l.b16 %v265
    %v475 = vunpack.c.h.b16 %v265
    %v476 = vunpack.c.l.b16 %v266
    %v477 = vunpack.c.h.b16 %v266
    %v478 = vunpack.c.l.b16 %v267
    %v479 = vunpack.c.h.b16 %v267
    %v480 = vunpack.c.l.b16 %v268
    %v481 = vunpack.c.h.b16 %v268
    %v482 = vunpack.c.l.b16 %v269
    %v483 = vunpack.c.h.b16 %v269
    %v484 = vunpack.c.l.b16 %v270
    %v485 = vunpack.c.h.b16 %v270
    %v486 = vunpack.c.l.b16 %v271
    %v487 = vunpack.c.h.b16 %v271
    %v488 = vunpack.c.l.b16 %v272
    %v489 = vunpack.c.h.b16 %v272
    %v490 = vunpack.c.l.b16 %v273
    %v491 = vunpack.c.h.b16 %v273
    %v492 = vunpack.c.l.b16 %v274
    %v493 = vunpack.c.h.b16 %v274
    %v494 = vunpack.c.l.b16 %v275
    %v495 = vunpack.c.h.b16 %v275
    %v496 = vunpack.c.l.b16 %v276
    %v497 = vunpack.c.h.b16 %v276
    %v498 = vunpack.c.l.b16 %v277
    %v499 = vunpack.c.h.b16 %v277
    %v500 = vunpack.c.l.b16 %v278
    %v501 = vunpack.c.h.b16 %v278
    %v502 = vunpack.c.l.b16 %v279
    %v503 = vunpack.c.h.b16 %v279
    %v504 = vunpack.c.l.b16 %v280
    %v505 = vunpack.c.h.b16 %v280
    %v506 = vunpack.c.l.b16 %v281
    %v507 = vunpack.c.h.b16 %v281
    %v508 = vunpack.c.l.b16 %v282
    %v509 = vunpack.c.h.b16 %v282
    %v510 = vunpack.c.l.b16 %v283
    %v511 = vunpack.c.h.b16 %v283
    %v512 = vunpack.c.l.b16 %v284
    %v513 = vunpack.c.h.b16 %v284
    %v514 = vunpack.c.l.b16 %v285
    %v515 = vunpack.c.h.b16 %v285
    %v516 = vunpack.c.l.b16 %v286
    %v517 = vunpack.c.h.b16 %v286
    %v518 = vunpack.c.l.b16 %v287
    %v519 = vunpack.c.h.b16 %v287
    %v520 = vunpack.c.l.b16 %v288
    %v521 = vunpack.c.h.b16 %v288
    %v522 = vunpack.c.l.b16 %v289
    %v523 = vunpack.c.h.b16 %v289
    %v524 = vunpack.c.l.b16 %v290
    %v525 = vunpack.c.h.b16 %v290
    %v526 = vunpack.c.l.b16 %v291
    %v527 = vunpack.c.h.b16 %v291
    %v528 = vunpack.c.l.b16 %v292
    %v529 = vunpack.c.h.b16 %v292
    %v530 = vunpack.c.l.b16 %v293
    %v531 = vunpack.c.h.b16 %v293
    %v532 = vunpack.c.l.b16 %v294
    %v533 = vunpack.c.h.b16 %v294
    %v534 = vunpack.c.l.b16 %v295
    %v535 = vunpack.c.h.b16 %v295
    %v536 = vunpack.c.l.b16 %v296
    %v537 = vunpack.c.h.b16 %v296
    %v538 = vunpack.c.l.b16 %v297
    %v539 = vunpack.c.h.b16 %v297
    %v540 = vunpack.c.l.b16 %v298
    %v541 = vunpack.c.h.b16 %v298
    %v542 = vunpack.c.l.b16 %v299
    %v543 = vunpack.c.h.b16 %v299
    %v544 = vunpack.c.l.b16 %v300
    %v545 = vunpack.c.h.b16 %v300
    %v546 = vunpack.c.l.b16 %v301
    %v547 = vunpack.c.h.b16 %v301
    %v548 = vunpack.c.l.b16 %v302
    %v549 = vunpack.c.h.b16 %v302
    %v550 = vunpack.c.l.b16 %v303
    %v551 = vunpack.c.h.b16 %v303
    %v552 = vunpack.c.l.b16 %v304
    %v553 = vunpack.c.h.b16 %v304
    %v554 = vunpack.c.l.b16 %v305
    %v555 = vunpack.c.h.b16 %v305
    %v556 = vunpack.c.l.b16 %v306
    %v557 = vunpack.c.h.b16 %v306
    %v558 = vunpack.c.l.b16 %v307
    %v559 = vunpack.c.h.b16 %v307
    %v560 = vunpack.c.l.b16 %v308
    %v561 = vunpack.c.h.b16 %v308
    %v562 = vunpack.c.l.b16 %v309
    %v563 = vunpack.c.h.b16 %v309
    %v564 = vunpack.c.l.b16 %v310
    %v565 = vunpack.c.h.b16 %v310
    %v566 = vunpack.c.l.b16 %v311
    %v567 = vunpack.c.h.b16 %v311
    %v568 = vunpack.c.l.b16 %v312
    %v569 = vunpack.c.h.b16 %v312
    %v570 = vunpack.c.l.b16 %v313
    %v571 = vunpack.c.h.b16 %v313
    %v572 = vunpack.c.l.b16 %v314
    %v573 = vunpack.c.h.b16 %v314
    %v574 = vunpack.c.l.b16 %v315
    %v575 = vunpack.c.h.b16 %v315
    %v576 = vunpack.c.l.b16 %v316
    %v577 = vunpack.c.h.b16 %v316
    %v578 = vunpack.c.l.b16 %v317
    %v579 = vunpack.c.h.b16 %v317
    %v580 = vunpack.c.l.b16 %v318
    %v581 = vunpack.c.h.b16 %v318
    %v582 = vunpack.c.l.b16 %v319
    %v583 = vunpack.c.h.b16 %v319
    %v584 = vunpack.c.l.b16 %v320
    %v585 = vunpack.c.h.b16 %v320
    %v586 = vunpack.c.l.b16 %v321
    %v587 = vunpack.c.h.b16 %v321
    %v588 = vunpack.c.l.b16 %v322
    %v589 = vunpack.c.h.b16 %v322
    %v590 = vunpack.c.l.b16 %v323
    %v591 = vunpack.c.h.b16 %v323
    %v592 = vunpack.c.l.b16 %v324
    %v593 = vunpack.c.h.b16 %v324
    %v594 = vunpack.c.l.b16 %v325
    %v595 = vunpack.c.h.b16 %v325
    %v596 = vunpack.c.l.b16 %v326
    %v597 = vunpack.c.h.b16 %v326
    %v598 = vunpack.c.l.b16 %v327
    %v599 = vunpack.c.h.b16 %v327
    %v600 = vunpack.c.l.b16 %v328
    %v601 = vunpack.c.h.b16 %v328
    %v602 = vunpack.c.l.b16 %v329
    %v603 = vunpack.c.h.b16 %v329
    %v604 = vunpack.c.l.b16 %v330
    %v605 = vunpack.c.h.b16 %v330
    %v606 = vunpack.c.l.b16 %v331
    %v607 = vunpack.c.h.b16 %v331
    %v608 = vunpack.c.l.b16 %v332
    %v609 = vunpack.c.h.b16 %v332
    %v610 = vunpack.c.l.b16 %v333
    %v611 = vunpack.c.h.b16 %v333
    %v612 = vunpack.c.l.b16 %v334
    %v613 = vunpack.c.h.b16 %v334
    %v614 = vunpack.c.l.b16 %v335
    %v615 = vunpack.c.h.b16 %v335
    %v616 = vunpack.c.l.b16 %v336
    %v617 = vunpack.c.h.b16 %v336
    %v618 = vunpack.c.l.b16 %v337
    %v619 = vunpack.c.h.b16 %v337
    %v620 = vunpack.c.l.b16 %v338
    %v621 = vunpack.c.h.b16 %v338
    %v622 = vunpack.c.l.b16 %v339
    %v623 = vunpack.c.h.b16 %v339
    %v624 = vunpack.c.l.b16 %v340
    %v625 = vunpack.c.h.b16 %v340
    %v626 = vunpack.c.l.b16 %v341
    %v627 = vunpack.c.h.b16 %v341
    %v628 = vunpack.c.l.b16 %v342
    %v629 = vunpack.c.h.b16 %v342
    %v630 = vunpack.c.l.b16 %v343
    %v631 = vunpack.c.h.b16 %v343
    %v632 = vpack.c.b16 %v442, %v440
    %v633 = vpack.c.b16 %v443, %v441
    %v634 = vpack.c.b16 %v446, %v444
    %v635 = vpack.c.b16 %v447, %v445
    %v636 = vpack.c.b16 %v450, %v448
    %v637 = vpack.c.b16 %v451, %v449
    %v638 = vpack.c.b16 %v454, %v452
    %v639 = vpack.c.b16 %v455, %v453
    %v640 = vpack.c.b16 %v458, %v456
    %v641 = vpack.c.b16 %v459, %v457
    %v642 = vpack.c.b16 %v462, %v460
    %v643 = vpack.c.b16 %v463, %v461
    %v644 = vpack.c.b16 %v466, %v464
    %v645 = vpack.c.b16 %v467, %v465
    %v646 = vpack.c.b16 %v470, %v468
    %v647 = vpack.c.b16 %v471, %v469
    %v648 = vpack.c.b16 %v474, %v472
    %v649 = vpack.c.b16 %v475, %v473
    %v650 = vpack.c.b16 %v478, %v476
    %v651 = vpack.c.b16 %v479, %v477
    %v652 = vpack.c.b16 %v482, %v480
    %v653 = vpack.c.b16 %v483, %v481
    %v654 = vpack.c.b16 %v486, %v484
    %v655 = vpack.c.b16 %v487, %v485
    %v656 = vpack.c.b16 %v490, %v488
    %v657 = vpack.c.b16 %v491, %v489
    %v658 = vpack.c.b16 %v494, %v492
    %v659 = vpack.c.b16 %v495, %v493
    %v660 = vpack.c.b16 %v498, %v496
    %v661 = vpack.c.b16 %v499, %v497
    %v662 = vpack.c.b16 %v502, %v500
    %v663 = vpack.c.b16 %v503, %v501
    %v664 = vpack.c.b16 %v506, %v504
    %v665 = vpack.c.b16 %v507, %v505
    %v666 = vpack.c.b16 %v510, %v508
    %v667 = vpack.c.b16 %v511, %v509
    %v668 = vpack.c.b16 %v514, %v512
    %v669 = vpack.c.b16 %v515, %v513
    %v670 = vpack.c.b16 %v518, %v516
    %v671 = vpack.c.b16 %v519, %v517
    %v672 = vpack.c.b16 %v522, %v520
    %v673 = vpack.c.b16 %v523, %v521
    %v674 = vpack.c.b16 %v526, %v524
    %v675 = vpack.c.b16 %v527, %v525
    %v676 = vpack.c.b16 %v530, %v528
    %v677 = vpack.c.b16 %v531, %v529
    %v678 = vpack.c.b16 %v534, %v532
    %v679 = vpack.c.b16 %v535, %v533
    %v680 = vpack.c.b16 %v538, %v536
    %v681 = vpack.c.b16 %v539, %v537
    %v682 = vpack.c.b16 %v542, %v540
    %v683 = vpack.c.b16 %v543, %v541
    %v684 = vpack.c.b16 %v546, %v544
    %v685 = vpack.c.b16 %v547, %v545
    %v686 = vpack.c.b16 %v550, %v548
    %v687 = vpack.c.b16 %v551, %v549
    %v688 = vpack.c.b16 %v554, %v552
    %v689 = vpack.c.b16 %v555, %v553
    %v690 = vpack.c.b16 %v558, %v556
    %v691 = vpack.c.b16 %v559, %v557
    %v692 = vpack.c.b16 %v562, %v560
    %v693 = vpack.c.b16 %v563, %v561
    %v694 = vpack.c.b16 %v566, %v564
    %v695 = vpack.c.b16 %v567, %v565
    %v696 = vpack.c.b16 %v570, %v568
    %v697 = vpack.c.b16 %v571, %v569
    %v698 = vpack.c.b16 %v574, %v572
    %v699 = vpack.c.b16 %v575, %v573
    %v700 = vpack.c.b16 %v578, %v576
    %v701 = vpack.c.b16 %v579, %v577
    %v702 = vpack.c.b16 %v582, %v580
    %v703 = vpack.c.b16 %v583, %v581
    %v704 = vpack.c.b16 %v586, %v584
    %v705 = vpack.c.b16 %v587, %v585
    %v706 = vpack.c.b16 %v590, %v588
    %v707 = vpack.c.b16 %v591, %v589
    %v708 = vpack.c.b16 %v594, %v592
    %v709 = vpack.c.b16 %v595, %v593
    %v710 = vpack.c.b16 %v598, %v596
    %v711 = vpack.c.b16 %v599, %v597
    %v712 = vpack.c.b16 %v602, %v600
    %v713 = vpack.c.b16 %v603, %v601
    %v714 = vpack.c.b16 %v606, %v604
    %v715 = vpack.c.b16 %v607, %v605
    %v716 = vpack.c.b16 %v610, %v608
    %v717 = vpack.c.b16 %v611, %v609
    %v718 = vpack.c.b16 %v614, %v612
    %v719 = vpack.c.b16 %v615, %v613
    %v720 = vpack.c.b16 %v618, %v616
    %v721 = vpack.c.b16 %v619, %v617
    %v722 = vpack.c.b16 %v622, %v620
    %v723 = vpack.c.b16 %v623, %v621
    %v724 = vpack.c.b16 %v626, %v624
    %v725 = vpack.c.b16 %v627, %v625
    %v726 = vpack.c.b16 %v630, %v628
    %v727 = vpack.c.b16 %v631, %v629
    %824 = vmatprep.subr.bf16.mxu0 %v647
    %825 = vmatpush1.bf16.msra.mxu0 %v646
    %826 = vmatprep.subr.bf16.mxu0 %v645
    %827 = vmatpush1.bf16.msra.mxu0 %v644
    %828 = vmatprep.subr.bf16.mxu0 %v643
    %829 = vmatpush1.bf16.msra.mxu0 %v642
    %830 = vmatprep.subr.bf16.mxu0 %v641
    %831 = vmatpush1.bf16.msra.mxu0 %v640
    %832 = vmatprep.subr.bf16.mxu0 %v639
    %833 = vmatpush1.bf16.msra.mxu0 %v638
    %834 = vmatprep.subr.bf16.mxu0 %v637
    %835 = vmatpush1.bf16.msra.mxu0 %v636
    %836 = vmatprep.subr.bf16.mxu0 %v635
    %837 = vmatpush1.bf16.msra.mxu0 %v634
    %838 = vmatprep.subr.bf16.mxu0 %v633
    %839 = vmatpush1.bf16.msra.mxu0 %v632
    %840 = vmatprep.subr.bf16.mxu0 %v663
    %841 = vmatpush2.bf16.msra.mxu0 %v662
    %842 = vmatprep.subr.bf16.mxu0 %v661
    %843 = vmatpush2.bf16.msra.mxu0 %v660
    %844 = vmatprep.subr.bf16.mxu0 %v659
    %845 = vmatpush2.bf16.msra.mxu0 %v658
    %846 = vmatprep.subr.bf16.mxu0 %v657
    %847 = vmatpush2.bf16.msra.mxu0 %v656
    %848 = vmatprep.subr.bf16.mxu0 %v655
    %849 = vmatpush2.bf16.msra.mxu0 %v654
    %850 = vmatprep.subr.bf16.mxu0 %v653
    %851 = vmatpush2.bf16.msra.mxu0 %v652
    %852 = vmatprep.subr.bf16.mxu0 %v651
    %853 = vmatpush2.bf16.msra.mxu0 %v650
    %854 = vmatprep.subr.bf16.mxu0 %v649
    %855 = vmatpush2.bf16.msra.mxu0 %v648
    %856 = vmatprep.mubr.bf16.mxu0 %v237
    %857 = vmatmul.mubr.bf16.gmra.mxu0 %v236
    %v858 = vpop.f32.mrf.mxu0
    %v859 = vadd.f32 0.0, %v858
    %v860 = vpop.f32.mrf.mxu0
    %v861 = vadd.f32 0.0, %v860
    %v862 = vpop.f32.mrf.mxu0
    %v863 = vadd.f32 0.0, %v862
    %v864 = vpop.f32.mrf.mxu0
    %v865 = vadd.f32 0.0, %v864
    %866 = vmatprep.mubr.bf16.mxu0 %v243
    %867 = vmatmul.mubr.bf16.gmra.mxu0 %v242
    %v868 = vpop.f32.mrf.mxu0
    %v869 = vadd.f32 0.0, %v868
    %v870 = vpop.f32.mrf.mxu0
    %v871 = vadd.f32 0.0, %v870
    %v872 = vpop.f32.mrf.mxu0
    %v873 = vadd.f32 0.0, %v872
    %v874 = vpop.f32.mrf.mxu0
    %v875 = vadd.f32 0.0, %v874
    %876 = vdwg.mxu0
    %877 = vmatprep.subr.bf16.mxu0 %v679
    %878 = vmatpush1.bf16.msra.mxu0 %v678
    %879 = vmatprep.subr.bf16.mxu0 %v677
    %880 = vmatpush1.bf16.msra.mxu0 %v676
    %881 = vmatprep.subr.bf16.mxu0 %v675
    %882 = vmatpush1.bf16.msra.mxu0 %v674
    %883 = vmatprep.subr.bf16.mxu0 %v673
    %884 = vmatpush1.bf16.msra.mxu0 %v672
    %885 = vmatprep.subr.bf16.mxu0 %v671
    %886 = vmatpush1.bf16.msra.mxu0 %v670
    %887 = vmatprep.subr.bf16.mxu0 %v669
    %888 = vmatpush1.bf16.msra.mxu0 %v668
    %889 = vmatprep.subr.bf16.mxu0 %v667
    %890 = vmatpush1.bf16.msra.mxu0 %v666
    %891 = vmatprep.subr.bf16.mxu0 %v665
    %892 = vmatpush1.bf16.msra.mxu0 %v664
    %893 = vmatprep.subr.bf16.mxu0 %v695
    %894 = vmatpush2.bf16.msra.mxu0 %v694
    %895 = vmatprep.subr.bf16.mxu0 %v693
    %896 = vmatpush2.bf16.msra.mxu0 %v692
    %897 = vmatprep.subr.bf16.mxu0 %v691
    %898 = vmatpush2.bf16.msra.mxu0 %v690
    %899 = vmatprep.subr.bf16.mxu0 %v689
    %900 = vmatpush2.bf16.msra.mxu0 %v688
    %901 = vmatprep.subr.bf16.mxu0 %v687
    %902 = vmatpush2.bf16.msra.mxu0 %v686
    %903 = vmatprep.subr.bf16.mxu0 %v685
    %904 = vmatpush2.bf16.msra.mxu0 %v684
    %905 = vmatprep.subr.bf16.mxu0 %v683
    %906 = vmatpush2.bf16.msra.mxu0 %v682
    %907 = vmatprep.subr.bf16.mxu0 %v681
    %908 = vmatpush2.bf16.msra.mxu0 %v680
    %909 = vmatprep.mubr.bf16.mxu0 %v239
    %910 = vmatmul.mubr.bf16.gmra.mxu0 %v238
    %v911 = vpop.f32.mrf.mxu0
    %v912 = vadd.f32 %v859, %v911
    %v913 = vpop.f32.mrf.mxu0
    %v914 = vadd.f32 %v861, %v913
    %v915 = vpop.f32.mrf.mxu0
    %v916 = vadd.f32 %v863, %v915
    %v917 = vpop.f32.mrf.mxu0
    %v918 = vadd.f32 %v865, %v917
    %919 = vmatprep.mubr.bf16.mxu0 %v245
    %920 = vmatmul.mubr.bf16.gmra.mxu0 %v244
    %v921 = vpop.f32.mrf.mxu0
    %v922 = vadd.f32 %v869, %v921
    %v923 = vpop.f32.mrf.mxu0
    %v924 = vadd.f32 %v871, %v923
    %v925 = vpop.f32.mrf.mxu0
    %v926 = vadd.f32 %v873, %v925
    %v927 = vpop.f32.mrf.mxu0
    %v928 = vadd.f32 %v875, %v927
    %929 = vdwg.mxu0
    %930 = vmatprep.subr.bf16.mxu0 %v711
    %931 = vmatpush1.bf16.msra.mxu0 %v710
    %932 = vmatprep.subr.bf16.mxu0 %v709
    %933 = vmatpush1.bf16.msra.mxu0 %v708
    %934 = vmatprep.subr.bf16.mxu0 %v707
    %935 = vmatpush1.bf16.msra.mxu0 %v706
    %936 = vmatprep.subr.bf16.mxu0 %v705
    %937 = vmatpush1.bf16.msra.mxu0 %v704
    %938 = vmatprep.subr.bf16.mxu0 %v703
    %939 = vmatpush1.bf16.msra.mxu0 %v702
    %940 = vmatprep.subr.bf16.mxu0 %v701
    %941 = vmatpush1.bf16.msra.mxu0 %v700
    %942 = vmatprep.subr.bf16.mxu0 %v699
    %943 = vmatpush1.bf16.msra.mxu0 %v698
    %944 = vmatprep.subr.bf16.mxu0 %v697
    %945 = vmatpush1.bf16.msra.mxu0 %v696
    %946 = vmatprep.subr.bf16.mxu0 %v727
    %947 = vmatpush2.bf16.msra.mxu0 %v726
    %948 = vmatprep.subr.bf16.mxu0 %v725
    %949 = vmatpush2.bf16.msra.mxu0 %v724
    %950 = vmatprep.subr.bf16.mxu0 %v723
    %951 = vmatpush2.bf16.msra.mxu0 %v722
    %952 = vmatprep.subr.bf16.mxu0 %v721
    %953 = vmatpush2.bf16.msra.mxu0 %v720
    %954 = vmatprep.subr.bf16.mxu0 %v719
    %955 = vmatpush2.bf16.msra.mxu0 %v718
    %956 = vmatprep.subr.bf16.mxu0 %v717
    %957 = vmatpush2.bf16.msra.mxu0 %v716
    %958 = vmatprep.subr.bf16.mxu0 %v715
    %959 = vmatpush2.bf16.msra.mxu0 %v714
    %960 = vmatprep.subr.bf16.mxu0 %v713
    %961 = vmatpush2.bf16.msra.mxu0 %v712
    %962 = vmatprep.mubr.bf16.mxu0 %v241
    %963 = vmatmul.mubr.bf16.gmra.mxu0 %v240
    %v964 = vpop.f32.mrf.mxu0
    %v965 = vadd.f32 %v912, %v964
    %v966 = vpop.f32.mrf.mxu0
    %v967 = vadd.f32 %v914, %v966
    %v968 = vpop.f32.mrf.mxu0
    %v969 = vadd.f32 %v916, %v968
    %v970 = vpop.f32.mrf.mxu0
    %v971 = vadd.f32 %v918, %v970
    %972 = vmatprep.mubr.bf16.mxu0 %v247
    %973 = vmatmul.mubr.bf16.gmra.mxu0 %v246
    %v974 = vpop.f32.mrf.mxu0
    %v975 = vadd.f32 %v922, %v974
    %v976 = vpop.f32.mrf.mxu0
    %v977 = vadd.f32 %v924, %v976
    %v978 = vpop.f32.mrf.mxu0
    %v979 = vadd.f32 %v926, %v978
    %v980 = vpop.f32.mrf.mxu0
    %v981 = vadd.f32 %v928, %v980
    %982 = vdwg.mxu0
    %v983 = vld [vmem:[%s2] sm:$0x3]
    %v984 = vld [vmem:[%s3] sm:$0x3]
    %v985 = vadd.f32 %v965, %v969
    %v986 = vadd.f32 %v985, %v975
    %v987 = vadd.f32 %v986, %v979
    %v988 = vrot.slane %v987, 4
    %v989 = vadd.f32 %v987, %v988
    %v990 = vrot.slane %v989, 2
    %v991 = vadd.f32 %v989, %v990
    %v992 = vrot.slane %v991, 1
    %v993 = vadd.f32 %v991, %v992
    %v994 = vadd.f32 %v967, %v971
    %v995 = vadd.f32 %v994, %v977
    %v996 = vadd.f32 %v995, %v981
    %v997 = vrot.slane %v996, 4
    %v998 = vadd.f32 %v996, %v997
    %v999 = vrot.slane %v998, 2
    %v1000 = vadd.f32 %v998, %v999
    %v1001 = vrot.slane %v1000, 1
    %v1002 = vadd.f32 %v1000, %v1001
    %v1003 = vmul.f32 %v965, %v965
    %v1004 = vmul.f32 %v967, %v967
    %v1005 = vmul.f32 %v969, %v969
    %v1006 = vmul.f32 %v971, %v971
    %v1007 = vmul.f32 %v975, %v975
    %v1008 = vmul.f32 %v977, %v977
    %v1009 = vmul.f32 %v979, %v979
    %v1010 = vmul.f32 %v981, %v981
    %v1011 = vadd.f32 %v1003, %v1005
    %v1012 = vadd.f32 %v1011, %v1007
    %v1013 = vadd.f32 %v1012, %v1009
    %v1014 = vrot.slane %v1013, 4
    %v1015 = vadd.f32 %v1013, %v1014
    %v1016 = vrot.slane %v1015, 2
    %v1017 = vadd.f32 %v1015, %v1016
    %v1018 = vrot.slane %v1017, 1
    %v1019 = vadd.f32 %v1017, %v1018
    %v1020 = vadd.f32 %v1004, %v1006
    %v1021 = vadd.f32 %v1020, %v1008
    %v1022 = vadd.f32 %v1021, %v1010
    %v1023 = vrot.slane %v1022, 4
    %v1024 = vadd.f32 %v1022, %v1023
    %v1025 = vrot.slane %v1024, 2
    %v1026 = vadd.f32 %v1024, %v1025
    %v1027 = vrot.slane %v1026, 1
    %v1028 = vadd.f32 %v1026, %v1027
    %vm1029 = vcmask 1040384
    %v1030 = vsel %vm1029, %v993, %v1019
    %v1031 = vsel %vm1029, %v1002, %v1028
    %v1032 = vpack.c.bf16 %v1030, %v1030
    %v1033 = vpack.c.bf16 %v1031, %v1031
    %v1066 = vunpack.c.l.b16 %v93
    %v1067 = vunpack.c.h.b16 %v93
    %v1068 = vunpack.c.l.b16 %v94
    %v1069 = vunpack.c.h.b16 %v94
    %v1070 = vunpack.c.l.b16 %v95
    %v1071 = vunpack.c.h.b16 %v95
    %v1072 = vunpack.c.l.b16 %v96
    %v1073 = vunpack.c.h.b16 %v96
    %v1074 = vunpack.c.l.b16 %v97
    %v1075 = vunpack.c.h.b16 %v97
    %v1076 = vunpack.c.l.b16 %v98
    %v1077 = vunpack.c.h.b16 %v98
    %v1078 = vunpack.c.l.b16 %v99
    %v1079 = vunpack.c.h.b16 %v99
    %v1080 = vunpack.c.l.b16 %v100
    %v1081 = vunpack.c.h.b16 %v100
    %v1082 = vunpack.c.l.b16 %v101
    %v1083 = vunpack.c.h.b16 %v101
    %v1084 = vunpack.c.l.b16 %v102
    %v1085 = vunpack.c.h.b16 %v102
    %v1086 = vunpack.c.l.b16 %v103
    %v1087 = vunpack.c.h.b16 %v103
    %v1088 = vunpack.c.l.b16 %v104
    %v1089 = vunpack.c.h.b16 %v104
    %v1090 = vunpack.c.l.b16 %v105
    %v1091 = vunpack.c.h.b16 %v105
    %v1092 = vunpack.c.l.b16 %v106
    %v1093 = vunpack.c.h.b16 %v106
    %v1094 = vunpack.c.l.b16 %v107
    %v1095 = vunpack.c.h.b16 %v107
    %v1096 = vunpack.c.l.b16 %v108
    %v1097 = vunpack.c.h.b16 %v108
    %v1098 = vunpack.c.l.b16 %v109
    %v1099 = vunpack.c.h.b16 %v109
    %v1100 = vunpack.c.l.b16 %v110
    %v1101 = vunpack.c.h.b16 %v110
    %v1102 = vunpack.c.l.b16 %v111
    %v1103 = vunpack.c.h.b16 %v111
    %v1104 = vunpack.c.l.b16 %v112
    %v1105 = vunpack.c.h.b16 %v112
    %v1106 = vunpack.c.l.b16 %v113
    %v1107 = vunpack.c.h.b16 %v113
    %v1108 = vunpack.c.l.b16 %v114
    %v1109 = vunpack.c.h.b16 %v114
    %v1110 = vunpack.c.l.b16 %v115
    %v1111 = vunpack.c.h.b16 %v115
    %v1112 = vunpack.c.l.b16 %v116
    %v1113 = vunpack.c.h.b16 %v116
    %v1114 = vunpack.c.l.b16 %v117
    %v1115 = vunpack.c.h.b16 %v117
    %v1116 = vunpack.c.l.b16 %v118
    %v1117 = vunpack.c.h.b16 %v118
    %v1118 = vunpack.c.l.b16 %v119
    %v1119 = vunpack.c.h.b16 %v119
    %v1120 = vunpack.c.l.b16 %v120
    %v1121 = vunpack.c.h.b16 %v120
    %v1122 = vunpack.c.l.b16 %v121
    %v1123 = vunpack.c.h.b16 %v121
    %v1124 = vunpack.c.l.b16 %v122
    %v1125 = vunpack.c.h.b16 %v122
    %v1126 = vunpack.c.l.b16 %v123
    %v1127 = vunpack.c.h.b16 %v123
    %v1128 = vunpack.c.l.b16 %v124
    %v1129 = vunpack.c.h.b16 %v124
    %v1130 = vpack.c.b16 %v1068, %v1066
    %v1131 = vpack.c.b16 %v1069, %v1067
    %v1132 = vpack.c.b16 %v1072, %v1070
    %v1133 = vpack.c.b16 %v1073, %v1071
    %v1134 = vpack.c.b16 %v1076, %v1074
    %v1135 = vpack.c.b16 %v1077, %v1075
    %v1136 = vpack.c.b16 %v1080, %v1078
    %v1137 = vpack.c.b16 %v1081, %v1079
    %v1138 = vpack.c.b16 %v1084, %v1082
    %v1139 = vpack.c.b16 %v1085, %v1083
    %v1140 = vpack.c.b16 %v1088, %v1086
    %v1141 = vpack.c.b16 %v1089, %v1087
    %v1142 = vpack.c.b16 %v1092, %v1090
    %v1143 = vpack.c.b16 %v1093, %v1091
    %v1144 = vpack.c.b16 %v1096, %v1094
    %v1145 = vpack.c.b16 %v1097, %v1095
    %v1146 = vpack.c.b16 %v1100, %v1098
    %v1147 = vpack.c.b16 %v1101, %v1099
    %v1148 = vpack.c.b16 %v1104, %v1102
    %v1149 = vpack.c.b16 %v1105, %v1103
    %v1150 = vpack.c.b16 %v1108, %v1106
    %v1151 = vpack.c.b16 %v1109, %v1107
    %v1152 = vpack.c.b16 %v1112, %v1110
    %v1153 = vpack.c.b16 %v1113, %v1111
    %v1154 = vpack.c.b16 %v1116, %v1114
    %v1155 = vpack.c.b16 %v1117, %v1115
    %v1156 = vpack.c.b16 %v1120, %v1118
    %v1157 = vpack.c.b16 %v1121, %v1119
    %v1158 = vpack.c.b16 %v1124, %v1122
    %v1159 = vpack.c.b16 %v1125, %v1123
    %v1160 = vpack.c.b16 %v1128, %v1126
    %v1161 = vpack.c.b16 %v1129, %v1127
    %1194 = vmatprep.subr.bf16.mxu0 %v1145
    %1195 = vmatpush1.bf16.msra.mxu0 %v1144
    %1196 = vmatprep.subr.bf16.mxu0 %v1143
    %1197 = vmatpush1.bf16.msra.mxu0 %v1142
    %1198 = vmatprep.subr.bf16.mxu0 %v1141
    %1199 = vmatpush1.bf16.msra.mxu0 %v1140
    %1200 = vmatprep.subr.bf16.mxu0 %v1139
    %1201 = vmatpush1.bf16.msra.mxu0 %v1138
    %1202 = vmatprep.subr.bf16.mxu0 %v1137
    %1203 = vmatpush1.bf16.msra.mxu0 %v1136
    %1204 = vmatprep.subr.bf16.mxu0 %v1135
    %1205 = vmatpush1.bf16.msra.mxu0 %v1134
    %1206 = vmatprep.subr.bf16.mxu0 %v1133
    %1207 = vmatpush1.bf16.msra.mxu0 %v1132
    %1208 = vmatprep.subr.bf16.mxu0 %v1131
    %1209 = vmatpush1.bf16.msra.mxu0 %v1130
    %1210 = vmatprep.subr.bf16.mxu0 %v1161
    %1211 = vmatpush2.bf16.msra.mxu0 %v1160
    %1212 = vmatprep.subr.bf16.mxu0 %v1159
    %1213 = vmatpush2.bf16.msra.mxu0 %v1158
    %1214 = vmatprep.subr.bf16.mxu0 %v1157
    %1215 = vmatpush2.bf16.msra.mxu0 %v1156
    %1216 = vmatprep.subr.bf16.mxu0 %v1155
    %1217 = vmatpush2.bf16.msra.mxu0 %v1154
    %1218 = vmatprep.subr.bf16.mxu0 %v1153
    %1219 = vmatpush2.bf16.msra.mxu0 %v1152
    %1220 = vmatprep.subr.bf16.mxu0 %v1151
    %1221 = vmatpush2.bf16.msra.mxu0 %v1150
    %1222 = vmatprep.subr.bf16.mxu0 %v1149
    %1223 = vmatpush2.bf16.msra.mxu0 %v1148
    %1224 = vmatprep.subr.bf16.mxu0 %v1147
    %1225 = vmatpush2.bf16.msra.mxu0 %v1146
    %1226 = vmatprep.mubr.bf16.mxu0 %v1033
    %1227 = vmatmul.mubr.bf16.gmra.mxu0 %v1032
    %v1228 = vpop.f32.mrf.mxu0
    %v1229 = vadd.f32 0.0, %v1228
    %v1230 = vpop.f32.mrf.mxu0
    %v1231 = vadd.f32 0.0, %v1230
    %v1232 = vpop.f32.mrf.mxu0
    %v1233 = vpop.f32.mrf.mxu0
    %1234 = vdwg.mxu0
    %v1235 = vmul.f32 %v1229, %v1229
    %v1236 = vmul.f32 %v1231, %v1231
    %v1239 = vrot.slane %v1235, 7
    %v1240 = vrot.slane %v1236, 7
    %v1243 = vsub.f32 %v1229, %v1239
    %v1244 = vsub.f32 %v1231, %v1240
    %v1245 = vlaneseq
    %v1246 = vshrl.u32 %v1245, 7
    %v1247 = vsub.s32 0, %v1246
    %v1248 = vrot.slane %v1229, %v1247
    %v1249 = vlaneseq
    %v1250 = vshrl.u32 %v1249, 7
    %v1251 = vsub.s32 0, %v1250
    %v1252 = vrot.slane %v1231, %v1251
    %v1253 = vsub.f32 %v965, %v1248
    %v1254 = vsub.f32 %v967, %v1252
    %v1255 = vsub.f32 %v969, %v1248
    %v1256 = vsub.f32 %v971, %v1252
    %v1257 = vsub.f32 %v975, %v1248
    %v1258 = vsub.f32 %v977, %v1252
    %v1259 = vsub.f32 %v979, %v1248
    %v1260 = vsub.f32 %v981, %v1252
    %v1261 = vadd.f32 %v1243, 1e-05
    %v1262 = vadd.f32 %v1244, 1e-05
    %v1263 = vrsqrt.pop %v1261
    %v1264 = vrsqrt.pop %v1262
    %v1265 = vlaneseq
    %v1266 = vshrl.u32 %v1265, 7
    %v1267 = vsub.s32 1, %v1266
    %v1268 = vrot.slane %v1263, %v1267
    %v1269 = vlaneseq
    %v1270 = vshrl.u32 %v1269, 7
    %v1271 = vsub.s32 1, %v1270
    %v1272 = vrot.slane %v1264, %v1271
    %v1273 = vmul.f32 %v1253, %v1268
    %v1274 = vmul.f32 %v1254, %v1272
    %v1275 = vmul.f32 %v1255, %v1268
    %v1276 = vmul.f32 %v1256, %v1272
    %v1277 = vmul.f32 %v1257, %v1268
    %v1278 = vmul.f32 %v1258, %v1272
    %v1279 = vmul.f32 %v1259, %v1268
    %v1280 = vmul.f32 %v1260, %v1272
    %v1282 = vlaneseq
    %v1283 = vshrl.u32 %v1282, 7
    %v1284 = vsub.s32 0, %v1283
    %v1285 = vrot.slane %v983, %v1284
    %v1286 = vlaneseq
    %v1287 = vshrl.u32 %v1286, 7
    %v1288 = vsub.s32 1, %v1287
    %v1289 = vrot.slane %v983, %v1288
    %v1292 = vmul.f32 %v1273, %v1285
    %v1293 = vmul.f32 %v1274, %v1289
    %v1294 = vmul.f32 %v1275, %v1285
    %v1295 = vmul.f32 %v1276, %v1289
    %v1296 = vmul.f32 %v1277, %v1285
    %v1297 = vmul.f32 %v1278, %v1289
    %v1298 = vmul.f32 %v1279, %v1285
    %v1299 = vmul.f32 %v1280, %v1289
    %v1301 = vlaneseq
    %v1302 = vshrl.u32 %v1301, 7
    %v1303 = vsub.s32 0, %v1302
    %v1304 = vrot.slane %v984, %v1303
    %v1305 = vlaneseq
    %v1306 = vshrl.u32 %v1305, 7
    %v1307 = vsub.s32 1, %v1306
    %v1308 = vrot.slane %v984, %v1307
    %v1311 = vadd.f32 %v1292, %v1304
    %v1312 = vadd.f32 %v1293, %v1308
    %v1313 = vadd.f32 %v1294, %v1304
    %v1314 = vadd.f32 %v1295, %v1308
    %v1315 = vadd.f32 %v1296, %v1304
    %v1316 = vadd.f32 %v1297, %v1308
    %v1317 = vadd.f32 %v1298, %v1304
    %v1318 = vadd.f32 %v1299, %v1308
    %v1319 = vmax.f32 %v1311, 0.0
    %v1320 = vmax.f32 %v1312, 0.0
    %v1321 = vmax.f32 %v1313, 0.0
    %v1322 = vmax.f32 %v1314, 0.0
    %v1323 = vmax.f32 %v1315, 0.0
    %v1324 = vmax.f32 %v1316, 0.0
    %v1325 = vmax.f32 %v1317, 0.0
    %v1326 = vmax.f32 %v1318, 0.0
    %v1327 = vrot.slane %v1319, 7
    %v1328 = vrot.slane %v1320, 7
    %v1329 = vrot.slane %v1321, 7
    %v1330 = vrot.slane %v1322, 7
    %v1331 = vrot.slane %v1323, 7
    %v1332 = vrot.slane %v1324, 7
    %v1333 = vrot.slane %v1325, 7
    %v1334 = vrot.slane %v1326, 7
    %v1335 = vsel %vm194, %v1331, %v1333
    %v1336 = vsel %vm194, %v1332, %v1334
    %v1337 = vsel %vm194, %v1329, %v1331
    %v1338 = vsel %vm194, %v1330, %v1332
    %v1339 = vsel %vm194, %v1327, %v1329
    %v1340 = vsel %vm194, %v1328, %v1330
    %v1341 = vsel %vm194, %v1333, %v1327
    %v1342 = vsel %vm194, %v1334, %v1328
    %v1343 = vsel %vm178, 0.0, %v1341
    %v1344 = vsel %vm178, 0.0, %v1342
    %v1345 = vsel %vm179, 0.0, %v1339
    %v1346 = vsel %vm179, 0.0, %v1340
    %v1347 = vsel %vm180, 0.0, %v1337
    %v1348 = vsel %vm180, 0.0, %v1338
    %v1349 = vsel %vm181, 0.0, %v1335
    %v1350 = vsel %vm181, 0.0, %v1336
    %v1351 = vrot.slane %v1319, 1
    %v1352 = vrot.slane %v1320, 1
    %v1353 = vrot.slane %v1321, 1
    %v1354 = vrot.slane %v1322, 1
    %v1355 = vrot.slane %v1323, 1
    %v1356 = vrot.slane %v1324, 1
    %v1357 = vrot.slane %v1325, 1
    %v1358 = vrot.slane %v1326, 1
    %v1359 = vsel %vm219, %v1355, %v1357
    %v1360 = vsel %vm219, %v1356, %v1358
    %v1361 = vsel %vm219, %v1353, %v1355
    %v1362 = vsel %vm219, %v1354, %v1356
    %v1363 = vsel %vm219, %v1351, %v1353
    %v1364 = vsel %vm219, %v1352, %v1354
    %v1365 = vsel %vm219, %v1357, %v1351
    %v1366 = vsel %vm219, %v1358, %v1352
    %v1367 = vsel %vm182, 0.0, %v1363
    %v1368 = vsel %vm182, 0.0, %v1364
    %v1369 = vsel %vm183, 0.0, %v1361
    %v1370 = vsel %vm183, 0.0, %v1362
    %v1371 = vsel %vm184, 0.0, %v1359
    %v1372 = vsel %vm184, 0.0, %v1360
    %v1373 = vsel %vm185, 0.0, %v1365
    %v1374 = vsel %vm185, 0.0, %v1366
    %v1375 = vpack.c.bf16 %v1345, %v1343
    %v1376 = vpack.c.bf16 %v1346, %v1344
    %v1377 = vpack.c.bf16 %v1321, %v1319
    %v1378 = vpack.c.bf16 %v1322, %v1320
    %v1379 = vpack.c.bf16 %v1369, %v1367
    %v1380 = vpack.c.bf16 %v1370, %v1368
    %v1381 = vpack.c.bf16 %v1349, %v1347
    %v1382 = vpack.c.bf16 %v1350, %v1348
    %v1383 = vpack.c.bf16 %v1325, %v1323
    %v1384 = vpack.c.bf16 %v1326, %v1324
    %v1385 = vpack.c.bf16 %v1373, %v1371
    %v1386 = vpack.c.bf16 %v1374, %v1372
    %v1387 = vld [vmem:[#allocation7] sm:$0xff]
    %v1388 = vld [vmem:[#allocation7 + $0x8] sm:$0xff]
    %v1389 = vld [vmem:[#allocation7 + $0x10] sm:$0xff]
    %v1390 = vld [vmem:[#allocation7 + $0x18] sm:$0xff]
    %v1391 = vld [vmem:[#allocation7 + $0x20] sm:$0xff]
    %v1392 = vld [vmem:[#allocation7 + $0x28] sm:$0xff]
    %v1393 = vld [vmem:[#allocation7 + $0x30] sm:$0xff]
    %v1394 = vld [vmem:[#allocation7 + $0x38] sm:$0xff]
    %v1395 = vld [vmem:[#allocation7 + $0x40] sm:$0xff]
    %v1396 = vld [vmem:[#allocation7 + $0x48] sm:$0xff]
    %v1397 = vld [vmem:[#allocation7 + $0x50] sm:$0xff]
    %v1398 = vld [vmem:[#allocation7 + $0x58] sm:$0xff]
    %v1399 = vld [vmem:[#allocation7 + $0x60] sm:$0xff]
    %v1400 = vld [vmem:[#allocation7 + $0x68] sm:$0xff]
    %v1401 = vld [vmem:[#allocation7 + $0x70] sm:$0xff]
    %v1402 = vld [vmem:[#allocation7 + $0x78] sm:$0xff]
    %v1403 = vld [vmem:[#allocation7 + $0x80] sm:$0xff]
    %v1404 = vld [vmem:[#allocation7 + $0x88] sm:$0xff]
    %v1405 = vld [vmem:[#allocation7 + $0x90] sm:$0xff]
    %v1406 = vld [vmem:[#allocation7 + $0x98] sm:$0xff]
    %v1407 = vld [vmem:[#allocation7 + $0xa0] sm:$0xff]
    %v1408 = vld [vmem:[#allocation7 + $0xa8] sm:$0xff]
    %v1409 = vld [vmem:[#allocation7 + $0xb0] sm:$0xff]
    %v1410 = vld [vmem:[#allocation7 + $0xb8] sm:$0xff]
    %v1411 = vld [vmem:[#allocation7 + $0xc0] sm:$0xff]
    %v1412 = vld [vmem:[#allocation7 + $0xc8] sm:$0xff]
    %v1413 = vld [vmem:[#allocation7 + $0xd0] sm:$0xff]
    %v1414 = vld [vmem:[#allocation7 + $0xd8] sm:$0xff]
    %v1415 = vld [vmem:[#allocation7 + $0xe0] sm:$0xff]
    %v1416 = vld [vmem:[#allocation7 + $0xe8] sm:$0xff]
    %v1417 = vld [vmem:[#allocation7 + $0xf0] sm:$0xff]
    %v1418 = vld [vmem:[#allocation7 + $0xf8] sm:$0xff]
    %v1419 = vld [vmem:[#allocation7 + $0x100] sm:$0xff]
    %v1420 = vld [vmem:[#allocation7 + $0x108] sm:$0xff]
    %v1421 = vld [vmem:[#allocation7 + $0x110] sm:$0xff]
    %v1422 = vld [vmem:[#allocation7 + $0x118] sm:$0xff]
    %v1423 = vld [vmem:[#allocation7 + $0x120] sm:$0xff]
    %v1424 = vld [vmem:[#allocation7 + $0x128] sm:$0xff]
    %v1425 = vld [vmem:[#allocation7 + $0x130] sm:$0xff]
    %v1426 = vld [vmem:[#allocation7 + $0x138] sm:$0xff]
    %v1427 = vld [vmem:[#allocation7 + $0x140] sm:$0xff]
    %v1428 = vld [vmem:[#allocation7 + $0x148] sm:$0xff]
    %v1429 = vld [vmem:[#allocation7 + $0x150] sm:$0xff]
    %v1430 = vld [vmem:[#allocation7 + $0x158] sm:$0xff]
    %v1431 = vld [vmem:[#allocation7 + $0x160] sm:$0xff]
    %v1432 = vld [vmem:[#allocation7 + $0x168] sm:$0xff]
    %v1433 = vld [vmem:[#allocation7 + $0x170] sm:$0xff]
    %v1434 = vld [vmem:[#allocation7 + $0x178] sm:$0xff]
    %v1435 = vld [vmem:[#allocation7 + $0x180] sm:$0xff]
    %v1436 = vld [vmem:[#allocation7 + $0x188] sm:$0xff]
    %v1437 = vld [vmem:[#allocation7 + $0x190] sm:$0xff]
    %v1438 = vld [vmem:[#allocation7 + $0x198] sm:$0xff]
    %v1439 = vld [vmem:[#allocation7 + $0x1a0] sm:$0xff]
    %v1440 = vld [vmem:[#allocation7 + $0x1a8] sm:$0xff]
    %v1441 = vld [vmem:[#allocation7 + $0x1b0] sm:$0xff]
    %v1442 = vld [vmem:[#allocation7 + $0x1b8] sm:$0xff]
    %v1443 = vld [vmem:[#allocation7 + $0x1c0] sm:$0xff]
    %v1444 = vld [vmem:[#allocation7 + $0x1c8] sm:$0xff]
    %v1445 = vld [vmem:[#allocation7 + $0x1d0] sm:$0xff]
    %v1446 = vld [vmem:[#allocation7 + $0x1d8] sm:$0xff]
    %v1447 = vld [vmem:[#allocation7 + $0x1e0] sm:$0xff]
    %v1448 = vld [vmem:[#allocation7 + $0x1e8] sm:$0xff]
    %v1449 = vld [vmem:[#allocation7 + $0x1f0] sm:$0xff]
    %v1450 = vld [vmem:[#allocation7 + $0x1f8] sm:$0xff]
    %v1451 = vld [vmem:[#allocation7 + $0x200] sm:$0xff]
    %v1452 = vld [vmem:[#allocation7 + $0x208] sm:$0xff]
    %v1453 = vld [vmem:[#allocation7 + $0x210] sm:$0xff]
    %v1454 = vld [vmem:[#allocation7 + $0x218] sm:$0xff]
    %v1455 = vld [vmem:[#allocation7 + $0x220] sm:$0xff]
    %v1456 = vld [vmem:[#allocation7 + $0x228] sm:$0xff]
    %v1457 = vld [vmem:[#allocation7 + $0x230] sm:$0xff]
    %v1458 = vld [vmem:[#allocation7 + $0x238] sm:$0xff]
    %v1459 = vld [vmem:[#allocation7 + $0x240] sm:$0xff]
    %v1460 = vld [vmem:[#allocation7 + $0x248] sm:$0xff]
    %v1461 = vld [vmem:[#allocation7 + $0x250] sm:$0xff]
    %v1462 = vld [vmem:[#allocation7 + $0x258] sm:$0xff]
    %v1463 = vld [vmem:[#allocation7 + $0x260] sm:$0xff]
    %v1464 = vld [vmem:[#allocation7 + $0x268] sm:$0xff]
    %v1465 = vld [vmem:[#allocation7 + $0x270] sm:$0xff]
    %v1466 = vld [vmem:[#allocation7 + $0x278] sm:$0xff]
    %v1467 = vld [vmem:[#allocation7 + $0x280] sm:$0xff]
    %v1468 = vld [vmem:[#allocation7 + $0x288] sm:$0xff]
    %v1469 = vld [vmem:[#allocation7 + $0x290] sm:$0xff]
    %v1470 = vld [vmem:[#allocation7 + $0x298] sm:$0xff]
    %v1471 = vld [vmem:[#allocation7 + $0x2a0] sm:$0xff]
    %v1472 = vld [vmem:[#allocation7 + $0x2a8] sm:$0xff]
    %v1473 = vld [vmem:[#allocation7 + $0x2b0] sm:$0xff]
    %v1474 = vld [vmem:[#allocation7 + $0x2b8] sm:$0xff]
    %v1475 = vld [vmem:[#allocation7 + $0x2c0] sm:$0xff]
    %v1476 = vld [vmem:[#allocation7 + $0x2c8] sm:$0xff]
    %v1477 = vld [vmem:[#allocation7 + $0x2d0] sm:$0xff]
    %v1478 = vld [vmem:[#allocation7 + $0x2d8] sm:$0xff]
    %v1479 = vld [vmem:[#allocation7 + $0x2e0] sm:$0xff]
    %v1480 = vld [vmem:[#allocation7 + $0x2e8] sm:$0xff]
    %v1481 = vld [vmem:[#allocation7 + $0x2f0] sm:$0xff]
    %v1482 = vld [vmem:[#allocation7 + $0x2f8] sm:$0xff]
    %v1579 = vunpack.c.l.b16 %v1387
    %v1580 = vunpack.c.h.b16 %v1387
    %v1581 = vunpack.c.l.b16 %v1388
    %v1582 = vunpack.c.h.b16 %v1388
    %v1583 = vunpack.c.l.b16 %v1389
    %v1584 = vunpack.c.h.b16 %v1389
    %v1585 = vunpack.c.l.b16 %v1390
    %v1586 = vunpack.c.h.b16 %v1390
    %v1587 = vunpack.c.l.b16 %v1391
    %v1588 = vunpack.c.h.b16 %v1391
    %v1589 = vunpack.c.l.b16 %v1392
    %v1590 = vunpack.c.h.b16 %v1392
    %v1591 = vunpack.c.l.b16 %v1393
    %v1592 = vunpack.c.h.b16 %v1393
    %v1593 = vunpack.c.l.b16 %v1394
    %v1594 = vunpack.c.h.b16 %v1394
    %v1595 = vunpack.c.l.b16 %v1395
    %v1596 = vunpack.c.h.b16 %v1395
    %v1597 = vunpack.c.l.b16 %v1396
    %v1598 = vunpack.c.h.b16 %v1396
    %v1599 = vunpack.c.l.b16 %v1397
    %v1600 = vunpack.c.h.b16 %v1397
    %v1601 = vunpack.c.l.b16 %v1398
    %v1602 = vunpack.c.h.b16 %v1398
    %v1603 = vunpack.c.l.b16 %v1399
    %v1604 = vunpack.c.h.b16 %v1399
    %v1605 = vunpack.c.l.b16 %v1400
    %v1606 = vunpack.c.h.b16 %v1400
    %v1607 = vunpack.c.l.b16 %v1401
    %v1608 = vunpack.c.h.b16 %v1401
    %v1609 = vunpack.c.l.b16 %v1402
    %v1610 = vunpack.c.h.b16 %v1402
    %v1611 = vunpack.c.l.b16 %v1403
    %v1612 = vunpack.c.h.b16 %v1403
    %v1613 = vunpack.c.l.b16 %v1404
    %v1614 = vunpack.c.h.b16 %v1404
    %v1615 = vunpack.c.l.b16 %v1405
    %v1616 = vunpack.c.h.b16 %v1405
    %v1617 = vunpack.c.l.b16 %v1406
    %v1618 = vunpack.c.h.b16 %v1406
    %v1619 = vunpack.c.l.b16 %v1407
    %v1620 = vunpack.c.h.b16 %v1407
    %v1621 = vunpack.c.l.b16 %v1408
    %v1622 = vunpack.c.h.b16 %v1408
    %v1623 = vunpack.c.l.b16 %v1409
    %v1624 = vunpack.c.h.b16 %v1409
    %v1625 = vunpack.c.l.b16 %v1410
    %v1626 = vunpack.c.h.b16 %v1410
    %v1627 = vunpack.c.l.b16 %v1411
    %v1628 = vunpack.c.h.b16 %v1411
    %v1629 = vunpack.c.l.b16 %v1412
    %v1630 = vunpack.c.h.b16 %v1412
    %v1631 = vunpack.c.l.b16 %v1413
    %v1632 = vunpack.c.h.b16 %v1413
    %v1633 = vunpack.c.l.b16 %v1414
    %v1634 = vunpack.c.h.b16 %v1414
    %v1635 = vunpack.c.l.b16 %v1415
    %v1636 = vunpack.c.h.b16 %v1415
    %v1637 = vunpack.c.l.b16 %v1416
    %v1638 = vunpack.c.h.b16 %v1416
    %v1639 = vunpack.c.l.b16 %v1417
    %v1640 = vunpack.c.h.b16 %v1417
    %v1641 = vunpack.c.l.b16 %v1418
    %v1642 = vunpack.c.h.b16 %v1418
    %v1643 = vunpack.c.l.b16 %v1419
    %v1644 = vunpack.c.h.b16 %v1419
    %v1645 = vunpack.c.l.b16 %v1420
    %v1646 = vunpack.c.h.b16 %v1420
    %v1647 = vunpack.c.l.b16 %v1421
    %v1648 = vunpack.c.h.b16 %v1421
    %v1649 = vunpack.c.l.b16 %v1422
    %v1650 = vunpack.c.h.b16 %v1422
    %v1651 = vunpack.c.l.b16 %v1423
    %v1652 = vunpack.c.h.b16 %v1423
    %v1653 = vunpack.c.l.b16 %v1424
    %v1654 = vunpack.c.h.b16 %v1424
    %v1655 = vunpack.c.l.b16 %v1425
    %v1656 = vunpack.c.h.b16 %v1425
    %v1657 = vunpack.c.l.b16 %v1426
    %v1658 = vunpack.c.h.b16 %v1426
    %v1659 = vunpack.c.l.b16 %v1427
    %v1660 = vunpack.c.h.b16 %v1427
    %v1661 = vunpack.c.l.b16 %v1428
    %v1662 = vunpack.c.h.b16 %v1428
    %v1663 = vunpack.c.l.b16 %v1429
    %v1664 = vunpack.c.h.b16 %v1429
    %v1665 = vunpack.c.l.b16 %v1430
    %v1666 = vunpack.c.h.b16 %v1430
    %v1667 = vunpack.c.l.b16 %v1431
    %v1668 = vunpack.c.h.b16 %v1431
    %v1669 = vunpack.c.l.b16 %v1432
    %v1670 = vunpack.c.h.b16 %v1432
    %v1671 = vunpack.c.l.b16 %v1433
    %v1672 = vunpack.c.h.b16 %v1433
    %v1673 = vunpack.c.l.b16 %v1434
    %v1674 = vunpack.c.h.b16 %v1434
    %v1675 = vunpack.c.l.b16 %v1435
    %v1676 = vunpack.c.h.b16 %v1435
    %v1677 = vunpack.c.l.b16 %v1436
    %v1678 = vunpack.c.h.b16 %v1436
    %v1679 = vunpack.c.l.b16 %v1437
    %v1680 = vunpack.c.h.b16 %v1437
    %v1681 = vunpack.c.l.b16 %v1438
    %v1682 = vunpack.c.h.b16 %v1438
    %v1683 = vunpack.c.l.b16 %v1439
    %v1684 = vunpack.c.h.b16 %v1439
    %v1685 = vunpack.c.l.b16 %v1440
    %v1686 = vunpack.c.h.b16 %v1440
    %v1687 = vunpack.c.l.b16 %v1441
    %v1688 = vunpack.c.h.b16 %v1441
    %v1689 = vunpack.c.l.b16 %v1442
    %v1690 = vunpack.c.h.b16 %v1442
    %v1691 = vunpack.c.l.b16 %v1443
    %v1692 = vunpack.c.h.b16 %v1443
    %v1693 = vunpack.c.l.b16 %v1444
    %v1694 = vunpack.c.h.b16 %v1444
    %v1695 = vunpack.c.l.b16 %v1445
    %v1696 = vunpack.c.h.b16 %v1445
    %v1697 = vunpack.c.l.b16 %v1446
    %v1698 = vunpack.c.h.b16 %v1446
    %v1699 = vunpack.c.l.b16 %v1447
    %v1700 = vunpack.c.h.b16 %v1447
    %v1701 = vunpack.c.l.b16 %v1448
    %v1702 = vunpack.c.h.b16 %v1448
    %v1703 = vunpack.c.l.b16 %v1449
    %v1704 = vunpack.c.h.b16 %v1449
    %v1705 = vunpack.c.l.b16 %v1450
    %v1706 = vunpack.c.h.b16 %v1450
    %v1707 = vunpack.c.l.b16 %v1451
    %v1708 = vunpack.c.h.b16 %v1451
    %v1709 = vunpack.c.l.b16 %v1452
    %v1710 = vunpack.c.h.b16 %v1452
    %v1711 = vunpack.c.l.b16 %v1453
    %v1712 = vunpack.c.h.b16 %v1453
    %v1713 = vunpack.c.l.b16 %v1454
    %v1714 = vunpack.c.h.b16 %v1454
    %v1715 = vunpack.c.l.b16 %v1455
    %v1716 = vunpack.c.h.b16 %v1455
    %v1717 = vunpack.c.l.b16 %v1456
    %v1718 = vunpack.c.h.b16 %v1456
    %v1719 = vunpack.c.l.b16 %v1457
    %v1720 = vunpack.c.h.b16 %v1457
    %v1721 = vunpack.c.l.b16 %v1458
    %v1722 = vunpack.c.h.b16 %v1458
    %v1723 = vunpack.c.l.b16 %v1459
    %v1724 = vunpack.c.h.b16 %v1459
    %v1725 = vunpack.c.l.b16 %v1460
    %v1726 = vunpack.c.h.b16 %v1460
    %v1727 = vunpack.c.l.b16 %v1461
    %v1728 = vunpack.c.h.b16 %v1461
    %v1729 = vunpack.c.l.b16 %v1462
    %v1730 = vunpack.c.h.b16 %v1462
    %v1731 = vunpack.c.l.b16 %v1463
    %v1732 = vunpack.c.h.b16 %v1463
    %v1733 = vunpack.c.l.b16 %v1464
    %v1734 = vunpack.c.h.b16 %v1464
    %v1735 = vunpack.c.l.b16 %v1465
    %v1736 = vunpack.c.h.b16 %v1465
    %v1737 = vunpack.c.l.b16 %v1466
    %v1738 = vunpack.c.h.b16 %v1466
    %v1739 = vunpack.c.l.b16 %v1467
    %v1740 = vunpack.c.h.b16 %v1467
    %v1741 = vunpack.c.l.b16 %v1468
    %v1742 = vunpack.c.h.b16 %v1468
    %v1743 = vunpack.c.l.b16 %v1469
    %v1744 = vunpack.c.h.b16 %v1469
    %v1745 = vunpack.c.l.b16 %v1470
    %v1746 = vunpack.c.h.b16 %v1470
    %v1747 = vunpack.c.l.b16 %v1471
    %v1748 = vunpack.c.h.b16 %v1471
    %v1749 = vunpack.c.l.b16 %v1472
    %v1750 = vunpack.c.h.b16 %v1472
    %v1751 = vunpack.c.l.b16 %v1473
    %v1752 = vunpack.c.h.b16 %v1473
    %v1753 = vunpack.c.l.b16 %v1474
    %v1754 = vunpack.c.h.b16 %v1474
    %v1755 = vunpack.c.l.b16 %v1475
    %v1756 = vunpack.c.h.b16 %v1475
    %v1757 = vunpack.c.l.b16 %v1476
    %v1758 = vunpack.c.h.b16 %v1476
    %v1759 = vunpack.c.l.b16 %v1477
    %v1760 = vunpack.c.h.b16 %v1477
    %v1761 = vunpack.c.l.b16 %v1478
    %v1762 = vunpack.c.h.b16 %v1478
    %v1763 = vunpack.c.l.b16 %v1479
    %v1764 = vunpack.c.h.b16 %v1479
    %v1765 = vunpack.c.l.b16 %v1480
    %v1766 = vunpack.c.h.b16 %v1480
    %v1767 = vunpack.c.l.b16 %v1481
    %v1768 = vunpack.c.h.b16 %v1481
    %v1769 = vunpack.c.l.b16 %v1482
    %v1770 = vunpack.c.h.b16 %v1482
    %v1771 = vpack.c.b16 %v1581, %v1579
    %v1772 = vpack.c.b16 %v1582, %v1580
    %v1773 = vpack.c.b16 %v1585, %v1583
    %v1774 = vpack.c.b16 %v1586, %v1584
    %v1775 = vpack.c.b16 %v1589, %v1587
    %v1776 = vpack.c.b16 %v1590, %v1588
    %v1777 = vpack.c.b16 %v1593, %v1591
    %v1778 = vpack.c.b16 %v1594, %v1592
    %v1779 = vpack.c.b16 %v1597, %v1595
    %v1780 = vpack.c.b16 %v1598, %v1596
    %v1781 = vpack.c.b16 %v1601, %v1599
    %v1782 = vpack.c.b16 %v1602, %v1600
    %v1783 = vpack.c.b16 %v1605, %v1603
    %v1784 = vpack.c.b16 %v1606, %v1604
    %v1785 = vpack.c.b16 %v1609, %v1607
    %v1786 = vpack.c.b16 %v1610, %v1608
    %v1787 = vpack.c.b16 %v1613, %v1611
    %v1788 = vpack.c.b16 %v1614, %v1612
    %v1789 = vpack.c.b16 %v1617, %v1615
    %v1790 = vpack.c.b16 %v1618, %v1616
    %v1791 = vpack.c.b16 %v1621, %v1619
    %v1792 = vpack.c.b16 %v1622, %v1620
    %v1793 = vpack.c.b16 %v1625, %v1623
    %v1794 = vpack.c.b16 %v1626, %v1624
    %v1795 = vpack.c.b16 %v1629, %v1627
    %v1796 = vpack.c.b16 %v1630, %v1628
    %v1797 = vpack.c.b16 %v1633, %v1631
    %v1798 = vpack.c.b16 %v1634, %v1632
    %v1799 = vpack.c.b16 %v1637, %v1635
    %v1800 = vpack.c.b16 %v1638, %v1636
    %v1801 = vpack.c.b16 %v1641, %v1639
    %v1802 = vpack.c.b16 %v1642, %v1640
    %v1803 = vpack.c.b16 %v1645, %v1643
    %v1804 = vpack.c.b16 %v1646, %v1644
    %v1805 = vpack.c.b16 %v1649, %v1647
    %v1806 = vpack.c.b16 %v1650, %v1648
    %v1807 = vpack.c.b16 %v1653, %v1651
    %v1808 = vpack.c.b16 %v1654, %v1652
    %v1809 = vpack.c.b16 %v1657, %v1655
    %v1810 = vpack.c.b16 %v1658, %v1656
    %v1811 = vpack.c.b16 %v1661, %v1659
    %v1812 = vpack.c.b16 %v1662, %v1660
    %v1813 = vpack.c.b16 %v1665, %v1663
    %v1814 = vpack.c.b16 %v1666, %v1664
    %v1815 = vpack.c.b16 %v1669, %v1667
    %v1816 = vpack.c.b16 %v1670, %v1668
    %v1817 = vpack.c.b16 %v1673, %v1671
    %v1818 = vpack.c.b16 %v1674, %v1672
    %v1819 = vpack.c.b16 %v1677, %v1675
    %v1820 = vpack.c.b16 %v1678, %v1676
    %v1821 = vpack.c.b16 %v1681, %v1679
    %v1822 = vpack.c.b16 %v1682, %v1680
    %v1823 = vpack.c.b16 %v1685, %v1683
    %v1824 = vpack.c.b16 %v1686, %v1684
    %v1825 = vpack.c.b16 %v1689, %v1687
    %v1826 = vpack.c.b16 %v1690, %v1688
    %v1827 = vpack.c.b16 %v1693, %v1691
    %v1828 = vpack.c.b16 %v1694, %v1692
    %v1829 = vpack.c.b16 %v1697, %v1695
    %v1830 = vpack.c.b16 %v1698, %v1696
    %v1831 = vpack.c.b16 %v1701, %v1699
    %v1832 = vpack.c.b16 %v1702, %v1700
    %v1833 = vpack.c.b16 %v1705, %v1703
    %v1834 = vpack.c.b16 %v1706, %v1704
    %v1835 = vpack.c.b16 %v1709, %v1707
    %v1836 = vpack.c.b16 %v1710, %v1708
    %v1837 = vpack.c.b16 %v1713, %v1711
    %v1838 = vpack.c.b16 %v1714, %v1712
    %v1839 = vpack.c.b16 %v1717, %v1715
    %v1840 = vpack.c.b16 %v1718, %v1716
    %v1841 = vpack.c.b16 %v1721, %v1719
    %v1842 = vpack.c.b16 %v1722, %v1720
    %v1843 = vpack.c.b16 %v1725, %v1723
    %v1844 = vpack.c.b16 %v1726, %v1724
    %v1845 = vpack.c.b16 %v1729, %v1727
    %v1846 = vpack.c.b16 %v1730, %v1728
    %v1847 = vpack.c.b16 %v1733, %v1731
    %v1848 = vpack.c.b16 %v1734, %v1732
    %v1849 = vpack.c.b16 %v1737, %v1735
    %v1850 = vpack.c.b16 %v1738, %v1736
    %v1851 = vpack.c.b16 %v1741, %v1739
    %v1852 = vpack.c.b16 %v1742, %v1740
    %v1853 = vpack.c.b16 %v1745, %v1743
    %v1854 = vpack.c.b16 %v1746, %v1744
    %v1855 = vpack.c.b16 %v1749, %v1747
    %v1856 = vpack.c.b16 %v1750, %v1748
    %v1857 = vpack.c.b16 %v1753, %v1751
    %v1858 = vpack.c.b16 %v1754, %v1752
    %v1859 = vpack.c.b16 %v1757, %v1755
    %v1860 = vpack.c.b16 %v1758, %v1756
    %v1861 = vpack.c.b16 %v1761, %v1759
    %v1862 = vpack.c.b16 %v1762, %v1760
    %v1863 = vpack.c.b16 %v1765, %v1763
    %v1864 = vpack.c.b16 %v1766, %v1764
    %v1865 = vpack.c.b16 %v1769, %v1767
    %v1866 = vpack.c.b16 %v1770, %v1768
    %1963 = vmatprep.subr.bf16.mxu0 %v1786
    %1964 = vmatpush1.bf16.msra.mxu0 %v1785
    %1965 = vmatprep.subr.bf16.mxu0 %v1784
    %1966 = vmatpush1.bf16.msra.mxu0 %v1783
    %1967 = vmatprep.subr.bf16.mxu0 %v1782
    %1968 = vmatpush1.bf16.msra.mxu0 %v1781
    %1969 = vmatprep.subr.bf16.mxu0 %v1780
    %1970 = vmatpush1.bf16.msra.mxu0 %v1779
    %1971 = vmatprep.subr.bf16.mxu0 %v1778
    %1972 = vmatpush1.bf16.msra.mxu0 %v1777
    %1973 = vmatprep.subr.bf16.mxu0 %v1776
    %1974 = vmatpush1.bf16.msra.mxu0 %v1775
    %1975 = vmatprep.subr.bf16.mxu0 %v1774
    %1976 = vmatpush1.bf16.msra.mxu0 %v1773
    %1977 = vmatprep.subr.bf16.mxu0 %v1772
    %1978 = vmatpush1.bf16.msra.mxu0 %v1771
    %1979 = vmatprep.subr.bf16.mxu0 %v1802
    %1980 = vmatpush2.bf16.msra.mxu0 %v1801
    %1981 = vmatprep.subr.bf16.mxu0 %v1800
    %1982 = vmatpush2.bf16.msra.mxu0 %v1799
    %1983 = vmatprep.subr.bf16.mxu0 %v1798
    %1984 = vmatpush2.bf16.msra.mxu0 %v1797
    %1985 = vmatprep.subr.bf16.mxu0 %v1796
    %1986 = vmatpush2.bf16.msra.mxu0 %v1795
    %1987 = vmatprep.subr.bf16.mxu0 %v1794
    %1988 = vmatpush2.bf16.msra.mxu0 %v1793
    %1989 = vmatprep.subr.bf16.mxu0 %v1792
    %1990 = vmatpush2.bf16.msra.mxu0 %v1791
    %1991 = vmatprep.subr.bf16.mxu0 %v1790
    %1992 = vmatpush2.bf16.msra.mxu0 %v1789
    %1993 = vmatprep.subr.bf16.mxu0 %v1788
    %1994 = vmatpush2.bf16.msra.mxu0 %v1787
    %1995 = vmatprep.mubr.bf16.mxu0 %v1376
    %1996 = vmatmul.mubr.bf16.gmra.mxu0 %v1375
    %v1997 = vpop.f32.mrf.mxu0
    %v1998 = vadd.f32 0.0, %v1997
    %v1999 = vpop.f32.mrf.mxu0
    %v2000 = vadd.f32 0.0, %v1999
    %v2001 = vpop.f32.mrf.mxu0
    %v2002 = vadd.f32 0.0, %v2001
    %v2003 = vpop.f32.mrf.mxu0
    %v2004 = vadd.f32 0.0, %v2003
    %2005 = vmatprep.mubr.bf16.mxu0 %v1382
    %2006 = vmatmul.mubr.bf16.gmra.mxu0 %v1381
    %v2007 = vpop.f32.mrf.mxu0
    %v2008 = vadd.f32 0.0, %v2007
    %v2009 = vpop.f32.mrf.mxu0
    %v2010 = vadd.f32 0.0, %v2009
    %v2011 = vpop.f32.mrf.mxu0
    %v2012 = vadd.f32 0.0, %v2011
    %v2013 = vpop.f32.mrf.mxu0
    %v2014 = vadd.f32 0.0, %v2013
    %2015 = vdwg.mxu0
    %2016 = vmatprep.subr.bf16.mxu0 %v1818
    %2017 = vmatpush1.bf16.msra.mxu0 %v1817
    %2018 = vmatprep.subr.bf16.mxu0 %v1816
    %2019 = vmatpush1.bf16.msra.mxu0 %v1815
    %2020 = vmatprep.subr.bf16.mxu0 %v1814
    %2021 = vmatpush1.bf16.msra.mxu0 %v1813
    %2022 = vmatprep.subr.bf16.mxu0 %v1812
    %2023 = vmatpush1.bf16.msra.mxu0 %v1811
    %2024 = vmatprep.subr.bf16.mxu0 %v1810
    %2025 = vmatpush1.bf16.msra.mxu0 %v1809
    %2026 = vmatprep.subr.bf16.mxu0 %v1808
    %2027 = vmatpush1.bf16.msra.mxu0 %v1807
    %2028 = vmatprep.subr.bf16.mxu0 %v1806
    %2029 = vmatpush1.bf16.msra.mxu0 %v1805
    %2030 = vmatprep.subr.bf16.mxu0 %v1804
    %2031 = vmatpush1.bf16.msra.mxu0 %v1803
    %2032 = vmatprep.subr.bf16.mxu0 %v1834
    %2033 = vmatpush2.bf16.msra.mxu0 %v1833
    %2034 = vmatprep.subr.bf16.mxu0 %v1832
    %2035 = vmatpush2.bf16.msra.mxu0 %v1831
    %2036 = vmatprep.subr.bf16.mxu0 %v1830
    %2037 = vmatpush2.bf16.msra.mxu0 %v1829
    %2038 = vmatprep.subr.bf16.mxu0 %v1828
    %2039 = vmatpush2.bf16.msra.mxu0 %v1827
    %2040 = vmatprep.subr.bf16.mxu0 %v1826
    %2041 = vmatpush2.bf16.msra.mxu0 %v1825
    %2042 = vmatprep.subr.bf16.mxu0 %v1824
    %2043 = vmatpush2.bf16.msra.mxu0 %v1823
    %2044 = vmatprep.subr.bf16.mxu0 %v1822
    %2045 = vmatpush2.bf16.msra.mxu0 %v1821
    %2046 = vmatprep.subr.bf16.mxu0 %v1820
    %2047 = vmatpush2.bf16.msra.mxu0 %v1819
    %2048 = vmatprep.mubr.bf16.mxu0 %v1378
    %2049 = vmatmul.mubr.bf16.gmra.mxu0 %v1377
    %v2050 = vpop.f32.mrf.mxu0
    %v2051 = vadd.f32 %v1998, %v2050
    %v2052 = vpop.f32.mrf.mxu0
    %v2053 = vadd.f32 %v2000, %v2052
    %v2054 = vpop.f32.mrf.mxu0
    %v2055 = vadd.f32 %v2002, %v2054
    %v2056 = vpop.f32.mrf.mxu0
    %v2057 = vadd.f32 %v2004, %v2056
    %2058 = vmatprep.mubr.bf16.mxu0 %v1384
    %2059 = vmatmul.mubr.bf16.gmra.mxu0 %v1383
    %v2060 = vpop.f32.mrf.mxu0
    %v2061 = vadd.f32 %v2008, %v2060
    %v2062 = vpop.f32.mrf.mxu0
    %v2063 = vadd.f32 %v2010, %v2062
    %v2064 = vpop.f32.mrf.mxu0
    %v2065 = vadd.f32 %v2012, %v2064
    %v2066 = vpop.f32.mrf.mxu0
    %v2067 = vadd.f32 %v2014, %v2066
    %2068 = vdwg.mxu0
    %2069 = vmatprep.subr.bf16.mxu0 %v1850
    %2070 = vmatpush1.bf16.msra.mxu0 %v1849
    %2071 = vmatprep.subr.bf16.mxu0 %v1848
    %2072 = vmatpush1.bf16.msra.mxu0 %v1847
    %2073 = vmatprep.subr.bf16.mxu0 %v1846
    %2074 = vmatpush1.bf16.msra.mxu0 %v1845
    %2075 = vmatprep.subr.bf16.mxu0 %v1844
    %2076 = vmatpush1.bf16.msra.mxu0 %v1843
    %2077 = vmatprep.subr.bf16.mxu0 %v1842
    %2078 = vmatpush1.bf16.msra.mxu0 %v1841
    %2079 = vmatprep.subr.bf16.mxu0 %v1840
    %2080 = vmatpush1.bf16.msra.mxu0 %v1839
    %2081 = vmatprep.subr.bf16.mxu0 %v1838
    %2082 = vmatpush1.bf16.msra.mxu0 %v1837
    %2083 = vmatprep.subr.bf16.mxu0 %v1836
    %2084 = vmatpush1.bf16.msra.mxu0 %v1835
    %2085 = vmatprep.subr.bf16.mxu0 %v1866
    %2086 = vmatpush2.bf16.msra.mxu0 %v1865
    %2087 = vmatprep.subr.bf16.mxu0 %v1864
    %2088 = vmatpush2.bf16.msra.mxu0 %v1863
    %2089 = vmatprep.subr.bf16.mxu0 %v1862
    %2090 = vmatpush2.bf16.msra.mxu0 %v1861
    %2091 = vmatprep.subr.bf16.mxu0 %v1860
    %2092 = vmatpush2.bf16.msra.mxu0 %v1859
    %2093 = vmatprep.subr.bf16.mxu0 %v1858
    %2094 = vmatpush2.bf16.msra.mxu0 %v1857
    %2095 = vmatprep.subr.bf16.mxu0 %v1856
    %2096 = vmatpush2.bf16.msra.mxu0 %v1855
    %2097 = vmatprep.subr.bf16.mxu0 %v1854
    %2098 = vmatpush2.bf16.msra.mxu0 %v1853
    %2099 = vmatprep.subr.bf16.mxu0 %v1852
    %2100 = vmatpush2.bf16.msra.mxu0 %v1851
    %2101 = vmatprep.mubr.bf16.mxu0 %v1380
    %2102 = vmatmul.mubr.bf16.gmra.mxu0 %v1379
    %v2103 = vpop.f32.mrf.mxu0
    %v2104 = vadd.f32 %v2051, %v2103
    %v2105 = vpop.f32.mrf.mxu0
    %v2106 = vadd.f32 %v2053, %v2105
    %v2107 = vpop.f32.mrf.mxu0
    %v2108 = vadd.f32 %v2055, %v2107
    %v2109 = vpop.f32.mrf.mxu0
    %v2110 = vadd.f32 %v2057, %v2109
    %2111 = vmatprep.mubr.bf16.mxu0 %v1386
    %2112 = vmatmul.mubr.bf16.gmra.mxu0 %v1385
    %v2113 = vpop.f32.mrf.mxu0
    %v2114 = vadd.f32 %v2061, %v2113
    %v2115 = vpop.f32.mrf.mxu0
    %v2116 = vadd.f32 %v2063, %v2115
    %v2117 = vpop.f32.mrf.mxu0
    %v2118 = vadd.f32 %v2065, %v2117
    %v2119 = vpop.f32.mrf.mxu0
    %v2120 = vadd.f32 %v2067, %v2119
    %2121 = vdwg.mxu0
    %v2122 = vld [vmem:[%s5] sm:$0x3]
    %v2123 = vld [vmem:[%s6] sm:$0x3]
    %v2124 = vadd.f32 %v2104, %v2108
    %v2125 = vadd.f32 %v2124, %v2114
    %v2126 = vadd.f32 %v2125, %v2118
    %v2127 = vrot.slane %v2126, 4
    %v2128 = vadd.f32 %v2126, %v2127
    %v2129 = vrot.slane %v2128, 2
    %v2130 = vadd.f32 %v2128, %v2129
    %v2131 = vrot.slane %v2130, 1
    %v2132 = vadd.f32 %v2130, %v2131
    %v2133 = vadd.f32 %v2106, %v2110
    %v2134 = vadd.f32 %v2133, %v2116
    %v2135 = vadd.f32 %v2134, %v2120
    %v2136 = vrot.slane %v2135, 4
    %v2137 = vadd.f32 %v2135, %v2136
    %v2138 = vrot.slane %v2137, 2
    %v2139 = vadd.f32 %v2137, %v2138
    %v2140 = vrot.slane %v2139, 1
    %v2141 = vadd.f32 %v2139, %v2140
    %v2142 = vmul.f32 %v2104, %v2104
    %v2143 = vmul.f32 %v2106, %v2106
    %v2144 = vmul.f32 %v2108, %v2108
    %v2145 = vmul.f32 %v2110, %v2110
    %v2146 = vmul.f32 %v2114, %v2114
    %v2147 = vmul.f32 %v2116, %v2116
    %v2148 = vmul.f32 %v2118, %v2118
    %v2149 = vmul.f32 %v2120, %v2120
    %v2150 = vadd.f32 %v2142, %v2144
    %v2151 = vadd.f32 %v2150, %v2146
    %v2152 = vadd.f32 %v2151, %v2148
    %v2153 = vrot.slane %v2152, 4
    %v2154 = vadd.f32 %v2152, %v2153
    %v2155 = vrot.slane %v2154, 2
    %v2156 = vadd.f32 %v2154, %v2155
    %v2157 = vrot.slane %v2156, 1
    %v2158 = vadd.f32 %v2156, %v2157
    %v2159 = vadd.f32 %v2143, %v2145
    %v2160 = vadd.f32 %v2159, %v2147
    %v2161 = vadd.f32 %v2160, %v2149
    %v2162 = vrot.slane %v2161, 4
    %v2163 = vadd.f32 %v2161, %v2162
    %v2164 = vrot.slane %v2163, 2
    %v2165 = vadd.f32 %v2163, %v2164
    %v2166 = vrot.slane %v2165, 1
    %v2167 = vadd.f32 %v2165, %v2166
    %v2168 = vsel %vm1029, %v2132, %v2158
    %v2169 = vsel %vm1029, %v2141, %v2167
    %v2170 = vpack.c.bf16 %v2168, %v2168
    %v2171 = vpack.c.bf16 %v2169, %v2169
    %2172 = vmatprep.subr.bf16.mxu0 %v1145
    %2173 = vmatpush1.bf16.msra.mxu0 %v1144
    %2174 = vmatprep.subr.bf16.mxu0 %v1143
    %2175 = vmatpush1.bf16.msra.mxu0 %v1142
    %2176 = vmatprep.subr.bf16.mxu0 %v1141
    %2177 = vmatpush1.bf16.msra.mxu0 %v1140
    %2178 = vmatprep.subr.bf16.mxu0 %v1139
    %2179 = vmatpush1.bf16.msra.mxu0 %v1138
    %2180 = vmatprep.subr.bf16.mxu0 %v1137
    %2181 = vmatpush1.bf16.msra.mxu0 %v1136
    %2182 = vmatprep.subr.bf16.mxu0 %v1135
    %2183 = vmatpush1.bf16.msra.mxu0 %v1134
    %2184 = vmatprep.subr.bf16.mxu0 %v1133
    %2185 = vmatpush1.bf16.msra.mxu0 %v1132
    %2186 = vmatprep.subr.bf16.mxu0 %v1131
    %2187 = vmatpush1.bf16.msra.mxu0 %v1130
    %2188 = vmatprep.subr.bf16.mxu0 %v1161
    %2189 = vmatpush2.bf16.msra.mxu0 %v1160
    %2190 = vmatprep.subr.bf16.mxu0 %v1159
    %2191 = vmatpush2.bf16.msra.mxu0 %v1158
    %2192 = vmatprep.subr.bf16.mxu0 %v1157
    %2193 = vmatpush2.bf16.msra.mxu0 %v1156
    %2194 = vmatprep.subr.bf16.mxu0 %v1155
    %2195 = vmatpush2.bf16.msra.mxu0 %v1154
    %2196 = vmatprep.subr.bf16.mxu0 %v1153
    %2197 = vmatpush2.bf16.msra.mxu0 %v1152
    %2198 = vmatprep.subr.bf16.mxu0 %v1151
    %2199 = vmatpush2.bf16.msra.mxu0 %v1150
    %2200 = vmatprep.subr.bf16.mxu0 %v1149
    %2201 = vmatpush2.bf16.msra.mxu0 %v1148
    %2202 = vmatprep.subr.bf16.mxu0 %v1147
    %2203 = vmatpush2.bf16.msra.mxu0 %v1146
    %2204 = vmatprep.mubr.bf16.mxu0 %v2171
    %2205 = vmatmul.mubr.bf16.gmra.mxu0 %v2170
    %v2206 = vpop.f32.mrf.mxu0
    %v2207 = vadd.f32 0.0, %v2206
    %v2208 = vpop.f32.mrf.mxu0
    %v2209 = vadd.f32 0.0, %v2208
    %v2210 = vpop.f32.mrf.mxu0
    %v2211 = vpop.f32.mrf.mxu0
    %2212 = vdwg.mxu0
    %v2213 = vmul.f32 %v2207, %v2207
    %v2214 = vmul.f32 %v2209, %v2209
    %v2217 = vrot.slane %v2213, 7
    %v2218 = vrot.slane %v2214, 7
    %v2221 = vsub.f32 %v2207, %v2217
    %v2222 = vsub.f32 %v2209, %v2218
    %v2223 = vlaneseq
    %v2224 = vshrl.u32 %v2223, 7
    %v2225 = vsub.s32 0, %v2224
    %v2226 = vrot.slane %v2207, %v2225
    %v2227 = vlaneseq
    %v2228 = vshrl.u32 %v2227, 7
    %v2229 = vsub.s32 0, %v2228
    %v2230 = vrot.slane %v2209, %v2229
    %v2231 = vsub.f32 %v2104, %v2226
    %v2232 = vsub.f32 %v2106, %v2230
    %v2233 = vsub.f32 %v2108, %v2226
    %v2234 = vsub.f32 %v2110, %v2230
    %v2235 = vsub.f32 %v2114, %v2226
    %v2236 = vsub.f32 %v2116, %v2230
    %v2237 = vsub.f32 %v2118, %v2226
    %v2238 = vsub.f32 %v2120, %v2230
    %v2239 = vadd.f32 %v2221, 1e-05
    %v2240 = vadd.f32 %v2222, 1e-05
    %v2241 = vrsqrt.pop %v2239
    %v2242 = vrsqrt.pop %v2240
    %v2243 = vlaneseq
    %v2244 = vshrl.u32 %v2243, 7
    %v2245 = vsub.s32 1, %v2244
    %v2246 = vrot.slane %v2241, %v2245
    %v2247 = vlaneseq
    %v2248 = vshrl.u32 %v2247, 7
    %v2249 = vsub.s32 1, %v2248
    %v2250 = vrot.slane %v2242, %v2249
    %v2251 = vmul.f32 %v2231, %v2246
    %v2252 = vmul.f32 %v2232, %v2250
    %v2253 = vmul.f32 %v2233, %v2246
    %v2254 = vmul.f32 %v2234, %v2250
    %v2255 = vmul.f32 %v2235, %v2246
    %v2256 = vmul.f32 %v2236, %v2250
    %v2257 = vmul.f32 %v2237, %v2246
    %v2258 = vmul.f32 %v2238, %v2250
    %v2260 = vlaneseq
    %v2261 = vshrl.u32 %v2260, 7
    %v2262 = vsub.s32 0, %v2261
    %v2263 = vrot.slane %v2122, %v2262
    %v2264 = vlaneseq
    %v2265 = vshrl.u32 %v2264, 7
    %v2266 = vsub.s32 1, %v2265
    %v2267 = vrot.slane %v2122, %v2266
    %v2270 = vmul.f32 %v2251, %v2263
    %v2271 = vmul.f32 %v2252, %v2267
    %v2272 = vmul.f32 %v2253, %v2263
    %v2273 = vmul.f32 %v2254, %v2267
    %v2274 = vmul.f32 %v2255, %v2263
    %v2275 = vmul.f32 %v2256, %v2267
    %v2276 = vmul.f32 %v2257, %v2263
    %v2277 = vmul.f32 %v2258, %v2267
    %v2279 = vlaneseq
    %v2280 = vshrl.u32 %v2279, 7
    %v2281 = vsub.s32 0, %v2280
    %v2282 = vrot.slane %v2123, %v2281
    %v2283 = vlaneseq
    %v2284 = vshrl.u32 %v2283, 7
    %v2285 = vsub.s32 1, %v2284
    %v2286 = vrot.slane %v2123, %v2285
    %v2289 = vadd.f32 %v2270, %v2282
    %v2290 = vadd.f32 %v2271, %v2286
    %v2291 = vadd.f32 %v2272, %v2282
    %v2292 = vadd.f32 %v2273, %v2286
    %v2293 = vadd.f32 %v2274, %v2282
    %v2294 = vadd.f32 %v2275, %v2286
    %v2295 = vadd.f32 %v2276, %v2282
    %v2296 = vadd.f32 %v2277, %v2286
    %v2297 = vadd.f32 %v85, %v2289
    %v2298 = vadd.f32 %v86, %v2290
    %v2299 = vadd.f32 %v87, %v2291
    %v2300 = vadd.f32 %v88, %v2292
    %v2301 = vadd.f32 %v89, %v2293
    %v2302 = vadd.f32 %v90, %v2294
    %v2303 = vadd.f32 %v91, %v2295
    %v2304 = vadd.f32 %v92, %v2296
    %v2305 = vmax.f32 %v2297, 0.0
    %v2306 = vmax.f32 %v2298, 0.0
    %v2307 = vmax.f32 %v2299, 0.0
    %v2308 = vmax.f32 %v2300, 0.0
    %v2309 = vmax.f32 %v2301, 0.0
    %v2310 = vmax.f32 %v2302, 0.0
    %v2311 = vmax.f32 %v2303, 0.0
    %v2312 = vmax.f32 %v2304, 0.0
    %2313 = vst [vmem:[#allocation10] sm:$0xff] %v2305
    %2314 = vst [vmem:[#allocation10 + $0x8] sm:$0xff] %v2306
    %2315 = vst [vmem:[#allocation10 + $0x10] sm:$0xff] %v2307
    %2316 = vst [vmem:[#allocation10 + $0x18] sm:$0xff] %v2308
    %2317 = vst [vmem:[#allocation10 + $0x20] sm:$0xff] %v2309
    %2318 = vst [vmem:[#allocation10 + $0x28] sm:$0xff] %v2310
    %2319 = vst [vmem:[#allocation10 + $0x30] sm:$0xff] %v2311
    %2320 = vst [vmem:[#allocation10 + $0x38] sm:$0xff] %v2312
    // Predicated region
    $region50: #{tpu_custom_call.1} parent=1 // pred_check
      _
    $region51: #{tpu_custom_call.1} parent=1 // pred_check_branch
      %2322 = sbr.rel (0) target = $region53
    $region52: #{tpu_custom_call.1} parent=1 // pred_region
      %s2324 = ssub.s32 1024, 1024
      %2325 = vsyncadd [#allocation4], %s2324
      %s2326 = sshll.u32 [#allocation10], 4
      %s2327 = int_to_ptr.vmem [resolvable:$true] %s2326
      %2332 = dma.vmem_to_hbm [thread:$0]  %s2327, 1024, %s8, [#allocation4], 256, 256, 16
    $region53: #{tpu_custom_call.1} parent=1 // pred_fallthru
      _
    // Predicated region
    $region54: #{tpu_custom_call.1} parent=1 // pred_check
      _
    $region55: #{tpu_custom_call.1} parent=1 // pred_check_branch
      %2334 = sbr.rel (0) target = $region57
    $region56: #{tpu_custom_call.1} parent=1 // pred_region
      %2335 = dma.done [#allocation4], 1024
    $region57: #{tpu_custom_call.1} parent=1 // pred_fallthru
      _
    %2336 = vsyncpa [#allocation3], 1
    %2337 = vsyncpa [#allocation6], 1
    %2338 = vsyncpa [#allocation9], 1
    %2339 = vsyncpa [#allocation4], 1

</llo_original>
